<compile_context>
chip_gen: v5e
topology: v5e:2x2
jax: 0.10.0
libtpu: 0.0.40
codegen_flags: <defaults>
</compile_context>

<pallas_src>
import functools
import math

import jax
import jax.numpy as jnp
import numpy as np
from jax import lax
from jax.experimental import pallas as pl
from jax.experimental.pallas import tpu as pltpu


def _layernorm(x, gamma, beta, eps=1e-5):
    mu = jnp.mean(x, axis=-1, keepdims=True)
    var = jnp.mean((x - mu) ** 2, axis=-1, keepdims=True)
    return (x - mu) * lax.rsqrt(var + eps) * gamma + beta


def decoder_layer_kernel(x_ref, k_ref, v_ref,
                         wq_ref, bq_ref, wo_ref, bo_ref,
                         g2_ref, be2_ref,
                         w1_ref, b1_ref, w2_ref, b2_ref,
                         g3_ref, be3_ref,
                         out_ref,
                         o_scr, *, n_heads):
    TL, D = x_ref.shape[1], x_ref.shape[2]
    dh = D // n_heads
    scale = 1.0 / math.sqrt(dh)
    cdt = x_ref.dtype                                   # MXU compute dtype (bf16)

    x = x_ref[0]                                        # [TL, D] bf16

    # ---- multi-head cross attention (heads on leading axes -> free Ref views) ----
    for h in range(n_heads):                            # static unroll, H small
        lo = h * dh
        # Q projection for this head: x @ wq[h] (wq is head-major (H, D, dh)).
        qh = (jnp.dot(x, wq_ref[h], preferred_element_type=jnp.float32)
              + bq_ref[h]).astype(cdt)                  # [TL, dh]
        kh = k_ref[0, h]                                # [S, dh] bf16 (leading-axis view)
        vh = v_ref[0, h]                                # [S, dh] bf16
        s = lax.dot_general(qh, kh, (((1,), (1,)), ((), ())),
                            preferred_element_type=jnp.float32) * scale   # [TL, S]
        s = s - jnp.max(s, axis=-1, keepdims=True)
        p = jnp.exp(s)
        p = p * pl.reciprocal(jnp.sum(p, axis=-1, keepdims=True), approx=True)
        oh = jnp.dot(p.astype(cdt), vh, preferred_element_type=jnp.float32)   # [TL, dh]
        o_scr[:, lo:lo + dh] = oh.astype(o_scr.dtype)

    # ---- output projection: single matmul with full contraction depth K = D ----
    attn = jnp.dot(o_scr[...], wo_ref[...],
                   preferred_element_type=jnp.float32) + bo_ref[...]          # [TL, D]

    # ---- residual + norm2 (dropout is identity in eval mode) ----
    xn = _layernorm(x.astype(jnp.float32) + attn, g2_ref[...], be2_ref[...])

    # ---- position-wise FFN: 1x1 conv -> relu -> 1x1 conv ----
    h1 = jnp.dot(xn.astype(cdt), w1_ref[...],
                 preferred_element_type=jnp.float32) + b1_ref[...]
    h1 = jnp.maximum(h1, 0.0)
    y = jnp.dot(h1.astype(cdt), w2_ref[...],
                preferred_element_type=jnp.float32) + b2_ref[...]

    # ---- residual + norm3 ----
    out_ref[0] = _layernorm(xn + y, g3_ref[...], be3_ref[...]).astype(out_ref.dtype)


def _pick_vmem_limit():
    try:
        kind = jax.devices()[0].device_kind.lower()
    except Exception:
        kind = ""
    if "v5" in kind or "v6" in kind:
        return 100 * 1024 * 1024          # 128 MiB physical -> raise scoped limit
    if "v7" in kind:
        return 48 * 1024 * 1024           # 64 MiB physical -> leave headroom
    return None                           # unknown chip: keep compiler default


def decoder_layer(x, cross, params, *, n_heads, compute_dtype=jnp.bfloat16, tile_l=None):
    B, L, D = x.shape
    _, S, _ = cross.shape
    d_ff = params["w1"].shape[1]
    dh = D // n_heads
    out_dtype = x.dtype
    cd = compute_dtype
    f32 = lambda a: a.astype(jnp.float32)

    # ---- L tiling: full extent for moderate L, otherwise 256-granular with padding ----
    if tile_l is None:
        tile_l = L if L <= 512 else 256
    L_pad = ((L + tile_l - 1) // tile_l) * tile_l
    nl = L_pad // tile_l

    xp = x
    if L_pad != L:
        xp = jnp.pad(x, ((0, 0), (0, L_pad - L), (0, 0)))
    xc = xp.astype(cd)

    # ---- hoisted K/V projection (plain XLA matmuls), stored head-major (B, H, S, dh) ----
    k_hm = (cross @ params["wk"] + params["bk"]).reshape(B, S, n_heads, dh)
    k_hm = jnp.transpose(k_hm, (0, 2, 1, 3)).astype(cd)
    v_hm = (cross @ params["wv"] + params["bv"]).reshape(B, S, n_heads, dh)
    v_hm = jnp.transpose(v_hm, (0, 2, 1, 3)).astype(cd)

    # ---- head-major Q weights: (H, D, dh) so per-head slices are leading-axis views ----
    wq_hm = jnp.transpose(params["wq"].reshape(D, n_heads, dh), (1, 0, 2)).astype(cd)
    bq_hm = jnp.transpose(params["bq"].reshape(1, n_heads, dh), (1, 0, 2)).astype(jnp.float32)

    wo = params["wo"].astype(cd)
    w1 = params["w1"].astype(cd)
    w2 = params["w2"].astype(cd)

    def full(shape):
        nd = len(shape)
        return pl.BlockSpec(shape, lambda b, l, nd=nd: (0,) * nd)

    in_specs = [
        pl.BlockSpec((1, tile_l, D), lambda b, l: (b, l, 0)),          # x tile
        pl.BlockSpec((1, n_heads, S, dh), lambda b, l: (b, 0, 0, 0)),  # K head-major
        pl.BlockSpec((1, n_heads, S, dh), lambda b, l: (b, 0, 0, 0)),  # V head-major
        full((n_heads, D, dh)), full((n_heads, 1, dh)),                # wq_hm, bq_hm
        full((D, D)), full((1, D)),                                    # wo, bo
        full((1, D)), full((1, D)),                                    # norm2 gamma, beta
        full((D, d_ff)), full((1, d_ff)),                              # conv1 w, b
        full((d_ff, D)), full((1, D)),                                 # conv2 w, b
        full((1, D)), full((1, D)),                                    # norm3 gamma, beta
    ]

    # Advisory cost estimate (KV projection now lives outside the kernel).
    flops = 2 * B * (L_pad * D * D            # q projection
                     + 2 * L_pad * S * D      # scores + p@v (all heads)
                     + L_pad * D * D          # output projection
                     + 2 * L_pad * D * d_ff)  # ffn
    transcendentals = B * n_heads * L_pad * S + 4 * B * L_pad
    itemsize = np.dtype(cd).itemsize
    bytes_accessed = ((wq_hm.size + wo.size + w1.size + w2.size) * itemsize
                      + (xc.size + k_hm.size + v_hm.size) * itemsize
                      + B * L_pad * D * np.dtype(out_dtype).itemsize)
    cost = pl.CostEstimate(flops=int(flops), transcendentals=int(transcendentals),
                           bytes_accessed=int(bytes_accessed))

    out = pl.pallas_call(
        functools.partial(decoder_layer_kernel, n_heads=n_heads),
        out_shape=jax.ShapeDtypeStruct((B, L_pad, D), out_dtype),
        grid_spec=pltpu.PrefetchScalarGridSpec(
            num_scalar_prefetch=0,
            grid=(B, nl),
            in_specs=in_specs,
            out_specs=pl.BlockSpec((1, tile_l, D), lambda b, l: (b, l, 0)),
            scratch_shapes=[pltpu.VMEM((tile_l, D), cd)],   # assembled head outputs
        ),
        compiler_params=pltpu.CompilerParams(
            dimension_semantics=("parallel", "parallel"),    # KV hoisted -> no carry on l
            vmem_limit_bytes=_pick_vmem_limit()),
        cost_estimate=cost,
    )(xc, k_hm, v_hm,
      wq_hm, bq_hm,
      wo, f32(params["bo"]),
      f32(params["g2"]), f32(params["be2"]),
      w1, f32(params["b1"]), w2, f32(params["b2"]),
      f32(params["g3"]), f32(params["be3"]))

    if L_pad != L:
        out = out[:, :L, :]
    return out


def decoder_layer_ref(x, cross, params, *, n_heads):
    """Pure-JAX f32 reference mirroring the PyTorch forward (eval mode)."""
    B, L, D = x.shape
    dh = D // n_heads
    scale = 1.0 / np.sqrt(dh)
    q = x @ params["wq"] + params["bq"]
    k = cross @ params["wk"] + params["bk"]
    v = cross @ params["wv"] + params["bv"]
    qh = q.reshape(B, L, n_heads, dh)
    kh = k.reshape(B, -1, n_heads, dh)
    vh = v.reshape(B, -1, n_heads, dh)
    s = jnp.einsum("blhd,bshd->bhls", qh, kh) * scale
    p = jax.nn.softmax(s, axis=-1)
    o = jnp.einsum("bhls,bshd->blhd", p, vh).reshape(B, L, D)
    attn = o @ params["wo"] + params["bo"]
    xn = _layernorm(x + attn, params["g2"], params["be2"])
    h1 = jnp.maximum(xn @ params["w1"] + params["b1"], 0.0)
    y = h1 @ params["w2"] + params["b2"]
    return _layernorm(xn + y, params["g3"], params["be3"])


if __name__ == "__main__":
    B, L, S, D, H = 2, 8, 12, 32, 4
    d_ff = 4 * D

    key = jax.random.PRNGKey(0)
    ks = jax.random.split(key, 16)
    f32 = jnp.float32

    params = {
        "wq": jax.random.normal(ks[0], (D, D), f32) * 0.1,
        "bq": jax.random.normal(ks[1], (1, D), f32) * 0.01,
        "wk": jax.random.normal(ks[2], (D, D), f32) * 0.1,
        "bk": jax.random.normal(ks[3], (1, D), f32) * 0.01,
        "wv": jax.random.normal(ks[4], (D, D), f32) * 0.1,
        "bv": jax.random.normal(ks[5], (1, D), f32) * 0.01,
        "wo": jax.random.normal(ks[6], (D, D), f32) * 0.1,
        "bo": jax.random.normal(ks[7], (1, D), f32) * 0.01,
        "g2": jnp.ones((1, D), f32),
        "be2": jnp.zeros((1, D), f32),
        # conv1: PyTorch weight [d_ff, D, 1] stored here transposed as (D, d_ff)
        "w1": jax.random.normal(ks[8], (D, d_ff), f32) * 0.1,
        "b1": jax.random.normal(ks[9], (1, d_ff), f32) * 0.01,
        # conv2: PyTorch weight [D, d_ff, 1] stored here transposed as (d_ff, D)
        "w2": jax.random.normal(ks[10], (d_ff, D), f32) * 0.1,
        "b2": jax.random.normal(ks[11], (1, D), f32) * 0.01,
        "g3": jnp.ones((1, D), f32),
        "be3": jnp.zeros((1, D), f32),
    }

    x = jax.random.normal(ks[12], (B, L, D), f32)
    cross = jax.random.normal(ks[13], (B, S, D), f32)

    out = decoder_layer(x, cross, params, n_heads=H)
    out = jax.block_until_ready(out)

    ref = jax.block_until_ready(decoder_layer_ref(x, cross, params, n_heads=H))
    # bf16 MXU inputs -> looser tolerance than an f32-only variant.
    np.testing.assert_allclose(np.asarray(out, dtype=np.float32), np.asarray(ref),
                               rtol=5e-2, atol=5e-2)

    print("KERNEL_OK")
</pallas_src>

<mosaic_0001>
module attributes {stable_mosaic.version = 11 : i64} {
  func.func @decoder_layer_kernel(%arg0: i32, %arg1: i32, %arg2: memref<1x8x32xbf16, #tpu.memory_space<vmem>>, %arg3: memref<1x4x12x8xbf16, #tpu.memory_space<vmem>>, %arg4: memref<1x4x12x8xbf16, #tpu.memory_space<vmem>>, %arg5: memref<4x32x8xbf16, #tpu.memory_space<vmem>>, %arg6: memref<4x1x8xf32, #tpu.memory_space<vmem>>, %arg7: memref<32x32xbf16, #tpu.memory_space<vmem>>, %arg8: memref<1x32xf32, #tpu.memory_space<vmem>>, %arg9: memref<1x32xf32, #tpu.memory_space<vmem>>, %arg10: memref<1x32xf32, #tpu.memory_space<vmem>>, %arg11: memref<32x128xbf16, #tpu.memory_space<vmem>>, %arg12: memref<1x128xf32, #tpu.memory_space<vmem>>, %arg13: memref<128x32xbf16, #tpu.memory_space<vmem>>, %arg14: memref<1x32xf32, #tpu.memory_space<vmem>>, %arg15: memref<1x32xf32, #tpu.memory_space<vmem>>, %arg16: memref<1x32xf32, #tpu.memory_space<vmem>>, %arg17: memref<1x8x32xf32, #tpu.memory_space<vmem>>, %arg18: memref<8x32xbf16, #tpu.memory_space<vmem>>) attributes {dimension_semantics = [#tpu.dimension_semantics<parallel>, #tpu.dimension_semantics<parallel>], iteration_bounds = array<i64: 2, 1>, scalar_prefetch = 0 : i64, scratch_operands = 1 : i64, tpu.core_type = #tpu.core_type<tc>, window_params = [{transform_indices = @transform_0, window_bounds = array<i64: 1, 8, 32>}, {transform_indices = @transform_1, window_bounds = array<i64: 1, 4, 12, 8>}, {transform_indices = @transform_2, window_bounds = array<i64: 1, 4, 12, 8>}, {pipeline_mode = #tpu.pipeline_mode<synchronous>, transform_indices = @transform_3, window_bounds = array<i64: 4, 32, 8>}, {pipeline_mode = #tpu.pipeline_mode<synchronous>, transform_indices = @transform_4, window_bounds = array<i64: 4, 1, 8>}, {pipeline_mode = #tpu.pipeline_mode<synchronous>, transform_indices = @transform_5, window_bounds = array<i64: 32, 32>}, {pipeline_mode = #tpu.pipeline_mode<synchronous>, transform_indices = @transform_6, window_bounds = array<i64: 1, 32>}, {pipeline_mode = #tpu.pipeline_mode<synchronous>, transform_indices = @transform_7, window_bounds = array<i64: 1, 32>}, {pipeline_mode = #tpu.pipeline_mode<synchronous>, transform_indices = @transform_8, window_bounds = array<i64: 1, 32>}, {pipeline_mode = #tpu.pipeline_mode<synchronous>, transform_indices = @transform_9, window_bounds = array<i64: 32, 128>}, {pipeline_mode = #tpu.pipeline_mode<synchronous>, transform_indices = @transform_10, window_bounds = array<i64: 1, 128>}, {pipeline_mode = #tpu.pipeline_mode<synchronous>, transform_indices = @transform_11, window_bounds = array<i64: 128, 32>}, {pipeline_mode = #tpu.pipeline_mode<synchronous>, transform_indices = @transform_12, window_bounds = array<i64: 1, 32>}, {pipeline_mode = #tpu.pipeline_mode<synchronous>, transform_indices = @transform_13, window_bounds = array<i64: 1, 32>}, {pipeline_mode = #tpu.pipeline_mode<synchronous>, transform_indices = @transform_14, window_bounds = array<i64: 1, 32>}, {transform_indices = @transform_15, window_bounds = array<i64: 1, 8, 32>}]} {
    %c0 = arith.constant 0 : index
    %c0_0 = arith.constant 0 : index
    %c0_1 = arith.constant 0 : index
    %0 = vector.load %arg2[%c0, %c0_0, %c0_1] : memref<1x8x32xbf16, #tpu.memory_space<vmem>>, vector<1x8x32xbf16>
    %1 = vector.shape_cast %0 : vector<1x8x32xbf16> to vector<8x32xbf16>
    %c0_2 = arith.constant 0 : index
    %c0_3 = arith.constant 0 : index
    %c0_4 = arith.constant 0 : index
    %2 = vector.load %arg5[%c0_2, %c0_3, %c0_4] : memref<4x32x8xbf16, #tpu.memory_space<vmem>>, vector<1x32x8xbf16>
    %3 = vector.shape_cast %2 : vector<1x32x8xbf16> to vector<32x8xbf16>
    %cst = arith.constant dense<0.000000e+00> : vector<8x8xf32>
    %4 = tpu.matmul %1, %3, %cst {dimension_numbers = #tpu.dot_dimension_numbers<[1], [0], [0], [1], [0, 0, 1, 1], [], []>} : vector<8x32xbf16>, vector<32x8xbf16>, vector<8x8xf32> -> vector<8x8xf32>
    %c0_5 = arith.constant 0 : index
    %c0_6 = arith.constant 0 : index
    %c0_7 = arith.constant 0 : index
    %5 = vector.load %arg6[%c0_5, %c0_6, %c0_7] : memref<4x1x8xf32, #tpu.memory_space<vmem>>, vector<1x1x8xf32>
    %6 = vector.shape_cast %5 : vector<1x1x8xf32> to vector<1x8xf32>
    %7 = vector.broadcast %6 : vector<1x8xf32> to vector<8x8xf32>
    %8 = arith.addf %4, %7 : vector<8x8xf32>
    %9 = arith.truncf %8 : vector<8x8xf32> to vector<8x8xbf16>
    %c0_8 = arith.constant 0 : index
    %c0_9 = arith.constant 0 : index
    %c0_10 = arith.constant 0 : index
    %c0_11 = arith.constant 0 : index
    %10 = vector.load %arg3[%c0_8, %c0_9, %c0_10, %c0_11] : memref<1x4x12x8xbf16, #tpu.memory_space<vmem>>, vector<1x1x12x8xbf16>
    %11 = vector.shape_cast %10 : vector<1x1x12x8xbf16> to vector<12x8xbf16>
    %c0_12 = arith.constant 0 : index
    %c0_13 = arith.constant 0 : index
    %c0_14 = arith.constant 0 : index
    %c0_15 = arith.constant 0 : index
    %12 = vector.load %arg4[%c0_12, %c0_13, %c0_14, %c0_15] : memref<1x4x12x8xbf16, #tpu.memory_space<vmem>>, vector<1x1x12x8xbf16>
    %13 = vector.shape_cast %12 : vector<1x1x12x8xbf16> to vector<12x8xbf16>
    %cst_16 = arith.constant dense<0.000000e+00> : vector<8x12xf32>
    %14 = tpu.matmul %9, %11, %cst_16 {dimension_numbers = #tpu.dot_dimension_numbers<[1], [1], [0], [0], [0, 0, 1, 0], [], []>} : vector<8x8xbf16>, vector<12x8xbf16>, vector<8x12xf32> -> vector<8x12xf32>
    %cst_17 = arith.constant 0.353553385 : f32
    %15 = vector.broadcast %cst_17 : f32 to vector<8x12xf32>
    %16 = arith.mulf %14, %15 : vector<8x12xf32>
    %cst_18 = arith.constant dense<0xFF800000> : vector<8xf32>
    %17 = vector.multi_reduction <maximumf>, %16, %cst_18 [1] : vector<8x12xf32> to vector<8xf32>
    %18 = vector.shape_cast %17 : vector<8xf32> to vector<8x1xf32>
    %19 = vector.broadcast %18 : vector<8x1xf32> to vector<8x12xf32>
    %20 = arith.subf %16, %19 : vector<8x12xf32>
    %21 = math.exp %20 : vector<8x12xf32>
    %cst_19 = arith.constant dense<0.000000e+00> : vector<8xf32>
    %22 = vector.multi_reduction <add>, %21, %cst_19 [1] : vector<8x12xf32> to vector<8xf32>
    %23 = vector.shape_cast %22 : vector<8xf32> to vector<8x1xf32>
    %24 = tpu.reciprocal %23 {approx = true} : vector<8x1xf32> -> vector<8x1xf32>
    %25 = vector.broadcast %24 : vector<8x1xf32> to vector<8x12xf32>
    %26 = arith.mulf %21, %25 : vector<8x12xf32>
    %27 = arith.truncf %26 : vector<8x12xf32> to vector<8x12xbf16>
    %cst_20 = arith.constant dense<0.000000e+00> : vector<8x8xf32>
    %28 = tpu.matmul %27, %13, %cst_20 {dimension_numbers = #tpu.dot_dimension_numbers<[1], [0], [0], [1], [0, 0, 1, 1], [], []>} : vector<8x12xbf16>, vector<12x8xbf16>, vector<8x8xf32> -> vector<8x8xf32>
    %29 = arith.truncf %28 : vector<8x8xf32> to vector<8x8xbf16>
    %c0_21 = arith.constant 0 : index
    %c0_22 = arith.constant 0 : index
    %30 = vector.load %arg18[%c0_21, %c0_22] : memref<8x32xbf16, #tpu.memory_space<vmem>>, vector<8x8xbf16>
    tpu.vector_store %arg18[%c0_21, %c0_22], %29 {strides = array<i32>} : memref<8x32xbf16, #tpu.memory_space<vmem>>, vector<8x8xbf16>,
    %c1 = arith.constant 1 : index
    %c0_23 = arith.constant 0 : index
    %c0_24 = arith.constant 0 : index
    %31 = vector.load %arg5[%c1, %c0_23, %c0_24] : memref<4x32x8xbf16, #tpu.memory_space<vmem>>, vector<1x32x8xbf16>
    %32 = vector.shape_cast %31 : vector<1x32x8xbf16> to vector<32x8xbf16>
    %cst_25 = arith.constant dense<0.000000e+00> : vector<8x8xf32>
    %33 = tpu.matmul %1, %32, %cst_25 {dimension_numbers = #tpu.dot_dimension_numbers<[1], [0], [0], [1], [0, 0, 1, 1], [], []>} : vector<8x32xbf16>, vector<32x8xbf16>, vector<8x8xf32> -> vector<8x8xf32>
    %c1_26 = arith.constant 1 : index
    %c0_27 = arith.constant 0 : index
    %c0_28 = arith.constant 0 : index
    %34 = vector.load %arg6[%c1_26, %c0_27, %c0_28] : memref<4x1x8xf32, #tpu.memory_space<vmem>>, vector<1x1x8xf32>
    %35 = vector.shape_cast %34 : vector<1x1x8xf32> to vector<1x8xf32>
    %36 = vector.broadcast %35 : vector<1x8xf32> to vector<8x8xf32>
    %37 = arith.addf %33, %36 : vector<8x8xf32>
    %38 = arith.truncf %37 : vector<8x8xf32> to vector<8x8xbf16>
    %c0_29 = arith.constant 0 : index
    %c1_30 = arith.constant 1 : index
    %c0_31 = arith.constant 0 : index
    %c0_32 = arith.constant 0 : index
    %39 = vector.load %arg3[%c0_29, %c1_30, %c0_31, %c0_32] : memref<1x4x12x8xbf16, #tpu.memory_space<vmem>>, vector<1x1x12x8xbf16>
    %40 = vector.shape_cast %39 : vector<1x1x12x8xbf16> to vector<12x8xbf16>
    %c0_33 = arith.constant 0 : index
    %c1_34 = arith.constant 1 : index
    %c0_35 = arith.constant 0 : index
    %c0_36 = arith.constant 0 : index
    %41 = vector.load %arg4[%c0_33, %c1_34, %c0_35, %c0_36] : memref<1x4x12x8xbf16, #tpu.memory_space<vmem>>, vector<1x1x12x8xbf16>
    %42 = vector.shape_cast %41 : vector<1x1x12x8xbf16> to vector<12x8xbf16>
    %cst_37 = arith.constant dense<0.000000e+00> : vector<8x12xf32>
    %43 = tpu.matmul %38, %40, %cst_37 {dimension_numbers = #tpu.dot_dimension_numbers<[1], [1], [0], [0], [0, 0, 1, 0], [], []>} : vector<8x8xbf16>, vector<12x8xbf16>, vector<8x12xf32> -> vector<8x12xf32>
    %cst_38 = arith.constant 0.353553385 : f32
    %44 = vector.broadcast %cst_38 : f32 to vector<8x12xf32>
    %45 = arith.mulf %43, %44 : vector<8x12xf32>
    %cst_39 = arith.constant dense<0xFF800000> : vector<8xf32>
    %46 = vector.multi_reduction <maximumf>, %45, %cst_39 [1] : vector<8x12xf32> to vector<8xf32>
    %47 = vector.shape_cast %46 : vector<8xf32> to vector<8x1xf32>
    %48 = vector.broadcast %47 : vector<8x1xf32> to vector<8x12xf32>
    %49 = arith.subf %45, %48 : vector<8x12xf32>
    %50 = math.exp %49 : vector<8x12xf32>
    %cst_40 = arith.constant dense<0.000000e+00> : vector<8xf32>
    %51 = vector.multi_reduction <add>, %50, %cst_40 [1] : vector<8x12xf32> to vector<8xf32>
    %52 = vector.shape_cast %51 : vector<8xf32> to vector<8x1xf32>
    %53 = tpu.reciprocal %52 {approx = true} : vector<8x1xf32> -> vector<8x1xf32>
    %54 = vector.broadcast %53 : vector<8x1xf32> to vector<8x12xf32>
    %55 = arith.mulf %50, %54 : vector<8x12xf32>
    %56 = arith.truncf %55 : vector<8x12xf32> to vector<8x12xbf16>
    %cst_41 = arith.constant dense<0.000000e+00> : vector<8x8xf32>
    %57 = tpu.matmul %56, %42, %cst_41 {dimension_numbers = #tpu.dot_dimension_numbers<[1], [0], [0], [1], [0, 0, 1, 1], [], []>} : vector<8x12xbf16>, vector<12x8xbf16>, vector<8x8xf32> -> vector<8x8xf32>
    %58 = arith.truncf %57 : vector<8x8xf32> to vector<8x8xbf16>
    %c0_42 = arith.constant 0 : index
    %c8 = arith.constant 8 : index
    %59 = vector.load %arg18[%c0_42, %c8] : memref<8x32xbf16, #tpu.memory_space<vmem>>, vector<8x8xbf16>
    tpu.vector_store %arg18[%c0_42, %c8], %58 {strides = array<i32>} : memref<8x32xbf16, #tpu.memory_space<vmem>>, vector<8x8xbf16>,
    %c2 = arith.constant 2 : index
    %c0_43 = arith.constant 0 : index
    %c0_44 = arith.constant 0 : index
    %60 = vector.load %arg5[%c2, %c0_43, %c0_44] : memref<4x32x8xbf16, #tpu.memory_space<vmem>>, vector<1x32x8xbf16>
    %61 = vector.shape_cast %60 : vector<1x32x8xbf16> to vector<32x8xbf16>
    %cst_45 = arith.constant dense<0.000000e+00> : vector<8x8xf32>
    %62 = tpu.matmul %1, %61, %cst_45 {dimension_numbers = #tpu.dot_dimension_numbers<[1], [0], [0], [1], [0, 0, 1, 1], [], []>} : vector<8x32xbf16>, vector<32x8xbf16>, vector<8x8xf32> -> vector<8x8xf32>
    %c2_46 = arith.constant 2 : index
    %c0_47 = arith.constant 0 : index
    %c0_48 = arith.constant 0 : index
    %63 = vector.load %arg6[%c2_46, %c0_47, %c0_48] : memref<4x1x8xf32, #tpu.memory_space<vmem>>, vector<1x1x8xf32>
    %64 = vector.shape_cast %63 : vector<1x1x8xf32> to vector<1x8xf32>
    %65 = vector.broadcast %64 : vector<1x8xf32> to vector<8x8xf32>
    %66 = arith.addf %62, %65 : vector<8x8xf32>
    %67 = arith.truncf %66 : vector<8x8xf32> to vector<8x8xbf16>
    %c0_49 = arith.constant 0 : index
    %c2_50 = arith.constant 2 : index
    %c0_51 = arith.constant 0 : index
    %c0_52 = arith.constant 0 : index
    %68 = vector.load %arg3[%c0_49, %c2_50, %c0_51, %c0_52] : memref<1x4x12x8xbf16, #tpu.memory_space<vmem>>, vector<1x1x12x8xbf16>
    %69 = vector.shape_cast %68 : vector<1x1x12x8xbf16> to vector<12x8xbf16>
    %c0_53 = arith.constant 0 : index
    %c2_54 = arith.constant 2 : index
    %c0_55 = arith.constant 0 : index
    %c0_56 = arith.constant 0 : index
    %70 = vector.load %arg4[%c0_53, %c2_54, %c0_55, %c0_56] : memref<1x4x12x8xbf16, #tpu.memory_space<vmem>>, vector<1x1x12x8xbf16>
    %71 = vector.shape_cast %70 : vector<1x1x12x8xbf16> to vector<12x8xbf16>
    %cst_57 = arith.constant dense<0.000000e+00> : vector<8x12xf32>
    %72 = tpu.matmul %67, %69, %cst_57 {dimension_numbers = #tpu.dot_dimension_numbers<[1], [1], [0], [0], [0, 0, 1, 0], [], []>} : vector<8x8xbf16>, vector<12x8xbf16>, vector<8x12xf32> -> vector<8x12xf32>
    %cst_58 = arith.constant 0.353553385 : f32
    %73 = vector.broadcast %cst_58 : f32 to vector<8x12xf32>
    %74 = arith.mulf %72, %73 : vector<8x12xf32>
    %cst_59 = arith.constant dense<0xFF800000> : vector<8xf32>
    %75 = vector.multi_reduction <maximumf>, %74, %cst_59 [1] : vector<8x12xf32> to vector<8xf32>
    %76 = vector.shape_cast %75 : vector<8xf32> to vector<8x1xf32>
    %77 = vector.broadcast %76 : vector<8x1xf32> to vector<8x12xf32>
    %78 = arith.subf %74, %77 : vector<8x12xf32>
    %79 = math.exp %78 : vector<8x12xf32>
    %cst_60 = arith.constant dense<0.000000e+00> : vector<8xf32>
    %80 = vector.multi_reduction <add>, %79, %cst_60 [1] : vector<8x12xf32> to vector<8xf32>
    %81 = vector.shape_cast %80 : vector<8xf32> to vector<8x1xf32>
    %82 = tpu.reciprocal %81 {approx = true} : vector<8x1xf32> -> vector<8x1xf32>
    %83 = vector.broadcast %82 : vector<8x1xf32> to vector<8x12xf32>
    %84 = arith.mulf %79, %83 : vector<8x12xf32>
    %85 = arith.truncf %84 : vector<8x12xf32> to vector<8x12xbf16>
    %cst_61 = arith.constant dense<0.000000e+00> : vector<8x8xf32>
    %86 = tpu.matmul %85, %71, %cst_61 {dimension_numbers = #tpu.dot_dimension_numbers<[1], [0], [0], [1], [0, 0, 1, 1], [], []>} : vector<8x12xbf16>, vector<12x8xbf16>, vector<8x8xf32> -> vector<8x8xf32>
    %87 = arith.truncf %86 : vector<8x8xf32> to vector<8x8xbf16>
    %c0_62 = arith.constant 0 : index
    %c16 = arith.constant 16 : index
    %88 = vector.load %arg18[%c0_62, %c16] : memref<8x32xbf16, #tpu.memory_space<vmem>>, vector<8x8xbf16>
    tpu.vector_store %arg18[%c0_62, %c16], %87 {strides = array<i32>} : memref<8x32xbf16, #tpu.memory_space<vmem>>, vector<8x8xbf16>,
    %c3 = arith.constant 3 : index
    %c0_63 = arith.constant 0 : index
    %c0_64 = arith.constant 0 : index
    %89 = vector.load %arg5[%c3, %c0_63, %c0_64] : memref<4x32x8xbf16, #tpu.memory_space<vmem>>, vector<1x32x8xbf16>
    %90 = vector.shape_cast %89 : vector<1x32x8xbf16> to vector<32x8xbf16>
    %cst_65 = arith.constant dense<0.000000e+00> : vector<8x8xf32>
    %91 = tpu.matmul %1, %90, %cst_65 {dimension_numbers = #tpu.dot_dimension_numbers<[1], [0], [0], [1], [0, 0, 1, 1], [], []>} : vector<8x32xbf16>, vector<32x8xbf16>, vector<8x8xf32> -> vector<8x8xf32>
    %c3_66 = arith.constant 3 : index
    %c0_67 = arith.constant 0 : index
    %c0_68 = arith.constant 0 : index
    %92 = vector.load %arg6[%c3_66, %c0_67, %c0_68] : memref<4x1x8xf32, #tpu.memory_space<vmem>>, vector<1x1x8xf32>
    %93 = vector.shape_cast %92 : vector<1x1x8xf32> to vector<1x8xf32>
    %94 = vector.broadcast %93 : vector<1x8xf32> to vector<8x8xf32>
    %95 = arith.addf %91, %94 : vector<8x8xf32>
    %96 = arith.truncf %95 : vector<8x8xf32> to vector<8x8xbf16>
    %c0_69 = arith.constant 0 : index
    %c3_70 = arith.constant 3 : index
    %c0_71 = arith.constant 0 : index
    %c0_72 = arith.constant 0 : index
    %97 = vector.load %arg3[%c0_69, %c3_70, %c0_71, %c0_72] : memref<1x4x12x8xbf16, #tpu.memory_space<vmem>>, vector<1x1x12x8xbf16>
    %98 = vector.shape_cast %97 : vector<1x1x12x8xbf16> to vector<12x8xbf16>
    %c0_73 = arith.constant 0 : index
    %c3_74 = arith.constant 3 : index
    %c0_75 = arith.constant 0 : index
    %c0_76 = arith.constant 0 : index
    %99 = vector.load %arg4[%c0_73, %c3_74, %c0_75, %c0_76] : memref<1x4x12x8xbf16, #tpu.memory_space<vmem>>, vector<1x1x12x8xbf16>
    %100 = vector.shape_cast %99 : vector<1x1x12x8xbf16> to vector<12x8xbf16>
    %cst_77 = arith.constant dense<0.000000e+00> : vector<8x12xf32>
    %101 = tpu.matmul %96, %98, %cst_77 {dimension_numbers = #tpu.dot_dimension_numbers<[1], [1], [0], [0], [0, 0, 1, 0], [], []>} : vector<8x8xbf16>, vector<12x8xbf16>, vector<8x12xf32> -> vector<8x12xf32>
    %cst_78 = arith.constant 0.353553385 : f32
    %102 = vector.broadcast %cst_78 : f32 to vector<8x12xf32>
    %103 = arith.mulf %101, %102 : vector<8x12xf32>
    %cst_79 = arith.constant dense<0xFF800000> : vector<8xf32>
    %104 = vector.multi_reduction <maximumf>, %103, %cst_79 [1] : vector<8x12xf32> to vector<8xf32>
    %105 = vector.shape_cast %104 : vector<8xf32> to vector<8x1xf32>
    %106 = vector.broadcast %105 : vector<8x1xf32> to vector<8x12xf32>
    %107 = arith.subf %103, %106 : vector<8x12xf32>
    %108 = math.exp %107 : vector<8x12xf32>
    %cst_80 = arith.constant dense<0.000000e+00> : vector<8xf32>
    %109 = vector.multi_reduction <add>, %108, %cst_80 [1] : vector<8x12xf32> to vector<8xf32>
    %110 = vector.shape_cast %109 : vector<8xf32> to vector<8x1xf32>
    %111 = tpu.reciprocal %110 {approx = true} : vector<8x1xf32> -> vector<8x1xf32>
    %112 = vector.broadcast %111 : vector<8x1xf32> to vector<8x12xf32>
    %113 = arith.mulf %108, %112 : vector<8x12xf32>
    %114 = arith.truncf %113 : vector<8x12xf32> to vector<8x12xbf16>
    %cst_81 = arith.constant dense<0.000000e+00> : vector<8x8xf32>
    %115 = tpu.matmul %114, %100, %cst_81 {dimension_numbers = #tpu.dot_dimension_numbers<[1], [0], [0], [1], [0, 0, 1, 1], [], []>} : vector<8x12xbf16>, vector<12x8xbf16>, vector<8x8xf32> -> vector<8x8xf32>
    %116 = arith.truncf %115 : vector<8x8xf32> to vector<8x8xbf16>
    %c0_82 = arith.constant 0 : index
    %c24 = arith.constant 24 : index
    %117 = vector.load %arg18[%c0_82, %c24] : memref<8x32xbf16, #tpu.memory_space<vmem>>, vector<8x8xbf16>
    tpu.vector_store %arg18[%c0_82, %c24], %116 {strides = array<i32>} : memref<8x32xbf16, #tpu.memory_space<vmem>>, vector<8x8xbf16>,
    %c0_83 = arith.constant 0 : index
    %c0_84 = arith.constant 0 : index
    %118 = vector.load %arg18[%c0_83, %c0_84] : memref<8x32xbf16, #tpu.memory_space<vmem>>, vector<8x32xbf16>
    %c0_85 = arith.constant 0 : index
    %c0_86 = arith.constant 0 : index
    %119 = vector.load %arg7[%c0_85, %c0_86] : memref<32x32xbf16, #tpu.memory_space<vmem>>, vector<32x32xbf16>
    %cst_87 = arith.constant dense<0.000000e+00> : vector<8x32xf32>
    %120 = tpu.matmul %118, %119, %cst_87 {dimension_numbers = #tpu.dot_dimension_numbers<[1], [0], [0], [1], [0, 0, 1, 1], [], []>} : vector<8x32xbf16>, vector<32x32xbf16>, vector<8x32xf32> -> vector<8x32xf32>
    %c0_88 = arith.constant 0 : index
    %c0_89 = arith.constant 0 : index
    %121 = vector.load %arg8[%c0_88, %c0_89] : memref<1x32xf32, #tpu.memory_space<vmem>>, vector<1x32xf32>
    %122 = vector.broadcast %121 : vector<1x32xf32> to vector<8x32xf32>
    %123 = arith.addf %120, %122 : vector<8x32xf32>
    %124 = arith.extf %1 : vector<8x32xbf16> to vector<8x32xf32>
    %125 = arith.addf %124, %123 : vector<8x32xf32>
    %c0_90 = arith.constant 0 : index
    %c0_91 = arith.constant 0 : index
    %126 = vector.load %arg9[%c0_90, %c0_91] : memref<1x32xf32, #tpu.memory_space<vmem>>, vector<1x32xf32>
    %c0_92 = arith.constant 0 : index
    %c0_93 = arith.constant 0 : index
    %127 = vector.load %arg10[%c0_92, %c0_93] : memref<1x32xf32, #tpu.memory_space<vmem>>, vector<1x32xf32>
    %cst_94 = arith.constant dense<0.000000e+00> : vector<8xf32>
    %128 = vector.multi_reduction <add>, %125, %cst_94 [1] : vector<8x32xf32> to vector<8xf32>
    %129 = vector.shape_cast %128 : vector<8xf32> to vector<8x1xf32>
    %cst_95 = arith.constant 3.200000e+01 : f32
    %130 = vector.broadcast %cst_95 : f32 to vector<8x1xf32>
    %131 = arith.divf %129, %130 : vector<8x1xf32>
    %132 = vector.broadcast %131 : vector<8x1xf32> to vector<8x32xf32>
    %133 = arith.subf %125, %132 : vector<8x32xf32>
    %134 = arith.mulf %133, %133 : vector<8x32xf32>
    %cst_96 = arith.constant dense<0.000000e+00> : vector<8xf32>
    %135 = vector.multi_reduction <add>, %134, %cst_96 [1] : vector<8x32xf32> to vector<8xf32>
    %136 = vector.shape_cast %135 : vector<8xf32> to vector<8x1xf32>
    %cst_97 = arith.constant 3.200000e+01 : f32
    %137 = vector.broadcast %cst_97 : f32 to vector<8x1xf32>
    %138 = arith.divf %136, %137 : vector<8x1xf32>
    %139 = vector.broadcast %131 : vector<8x1xf32> to vector<8x32xf32>
    %140 = arith.subf %125, %139 : vector<8x32xf32>
    %cst_98 = arith.constant 9.99999974E-6 : f32
    %141 = vector.broadcast %cst_98 : f32 to vector<8x1xf32>
    %142 = arith.addf %138, %141 : vector<8x1xf32>
    %143 = math.rsqrt %142 : vector<8x1xf32>
    %144 = vector.broadcast %143 : vector<8x1xf32> to vector<8x32xf32>
    %145 = arith.mulf %140, %144 : vector<8x32xf32>
    %146 = vector.broadcast %126 : vector<1x32xf32> to vector<8x32xf32>
    %147 = arith.mulf %145, %146 : vector<8x32xf32>
    %148 = vector.broadcast %127 : vector<1x32xf32> to vector<8x32xf32>
    %149 = arith.addf %147, %148 : vector<8x32xf32>
    %150 = arith.truncf %149 : vector<8x32xf32> to vector<8x32xbf16>
    %c0_99 = arith.constant 0 : index
    %c0_100 = arith.constant 0 : index
    %151 = vector.load %arg11[%c0_99, %c0_100] : memref<32x128xbf16, #tpu.memory_space<vmem>>, vector<32x128xbf16>
    %cst_101 = arith.constant dense<0.000000e+00> : vector<8x128xf32>
    %152 = tpu.matmul %150, %151, %cst_101 {dimension_numbers = #tpu.dot_dimension_numbers<[1], [0], [0], [1], [0, 0, 1, 1], [], []>} : vector<8x32xbf16>, vector<32x128xbf16>, vector<8x128xf32> -> vector<8x128xf32>
    %c0_102 = arith.constant 0 : index
    %c0_103 = arith.constant 0 : index
    %153 = vector.load %arg12[%c0_102, %c0_103] : memref<1x128xf32, #tpu.memory_space<vmem>>, vector<1x128xf32>
    %154 = vector.broadcast %153 : vector<1x128xf32> to vector<8x128xf32>
    %155 = arith.addf %152, %154 : vector<8x128xf32>
    %cst_104 = arith.constant 0.000000e+00 : f32
    %156 = vector.broadcast %cst_104 : f32 to vector<8x128xf32>
    %157 = arith.maximumf %155, %156 : vector<8x128xf32>
    %158 = arith.truncf %157 : vector<8x128xf32> to vector<8x128xbf16>
    %c0_105 = arith.constant 0 : index
    %c0_106 = arith.constant 0 : index
    %159 = vector.load %arg13[%c0_105, %c0_106] : memref<128x32xbf16, #tpu.memory_space<vmem>>, vector<128x32xbf16>
    %cst_107 = arith.constant dense<0.000000e+00> : vector<8x32xf32>
    %160 = tpu.matmul %158, %159, %cst_107 {dimension_numbers = #tpu.dot_dimension_numbers<[1], [0], [0], [1], [0, 0, 1, 1], [], []>} : vector<8x128xbf16>, vector<128x32xbf16>, vector<8x32xf32> -> vector<8x32xf32>
    %c0_108 = arith.constant 0 : index
    %c0_109 = arith.constant 0 : index
    %161 = vector.load %arg14[%c0_108, %c0_109] : memref<1x32xf32, #tpu.memory_space<vmem>>, vector<1x32xf32>
    %162 = vector.broadcast %161 : vector<1x32xf32> to vector<8x32xf32>
    %163 = arith.addf %160, %162 : vector<8x32xf32>
    %164 = arith.addf %149, %163 : vector<8x32xf32>
    %c0_110 = arith.constant 0 : index
    %c0_111 = arith.constant 0 : index
    %165 = vector.load %arg15[%c0_110, %c0_111] : memref<1x32xf32, #tpu.memory_space<vmem>>, vector<1x32xf32>
    %c0_112 = arith.constant 0 : index
    %c0_113 = arith.constant 0 : index
    %166 = vector.load %arg16[%c0_112, %c0_113] : memref<1x32xf32, #tpu.memory_space<vmem>>, vector<1x32xf32>
    %cst_114 = arith.constant dense<0.000000e+00> : vector<8xf32>
    %167 = vector.multi_reduction <add>, %164, %cst_114 [1] : vector<8x32xf32> to vector<8xf32>
    %168 = vector.shape_cast %167 : vector<8xf32> to vector<8x1xf32>
    %cst_115 = arith.constant 3.200000e+01 : f32
    %169 = vector.broadcast %cst_115 : f32 to vector<8x1xf32>
    %170 = arith.divf %168, %169 : vector<8x1xf32>
    %171 = vector.broadcast %170 : vector<8x1xf32> to vector<8x32xf32>
    %172 = arith.subf %164, %171 : vector<8x32xf32>
    %173 = arith.mulf %172, %172 : vector<8x32xf32>
    %cst_116 = arith.constant dense<0.000000e+00> : vector<8xf32>
    %174 = vector.multi_reduction <add>, %173, %cst_116 [1] : vector<8x32xf32> to vector<8xf32>
    %175 = vector.shape_cast %174 : vector<8xf32> to vector<8x1xf32>
    %cst_117 = arith.constant 3.200000e+01 : f32
    %176 = vector.broadcast %cst_117 : f32 to vector<8x1xf32>
    %177 = arith.divf %175, %176 : vector<8x1xf32>
    %178 = vector.broadcast %170 : vector<8x1xf32> to vector<8x32xf32>
    %179 = arith.subf %164, %178 : vector<8x32xf32>
    %cst_118 = arith.constant 9.99999974E-6 : f32
    %180 = vector.broadcast %cst_118 : f32 to vector<8x1xf32>
    %181 = arith.addf %177, %180 : vector<8x1xf32>
    %182 = math.rsqrt %181 : vector<8x1xf32>
    %183 = vector.broadcast %182 : vector<8x1xf32> to vector<8x32xf32>
    %184 = arith.mulf %179, %183 : vector<8x32xf32>
    %185 = vector.broadcast %165 : vector<1x32xf32> to vector<8x32xf32>
    %186 = arith.mulf %184, %185 : vector<8x32xf32>
    %187 = vector.broadcast %166 : vector<1x32xf32> to vector<8x32xf32>
    %188 = arith.addf %186, %187 : vector<8x32xf32>
    %c0_119 = arith.constant 0 : index
    %c0_120 = arith.constant 0 : index
    %c0_121 = arith.constant 0 : index
    %189 = vector.load %arg17[%c0_119, %c0_120, %c0_121] : memref<1x8x32xf32, #tpu.memory_space<vmem>>, vector<1x8x32xf32>
    %190 = vector.shape_cast %189 : vector<1x8x32xf32> to vector<8x32xf32>
    %191 = vector.shape_cast %188 : vector<8x32xf32> to vector<1x8x32xf32>
    tpu.vector_store %arg17[%c0_119, %c0_120, %c0_121], %191 {strides = array<i32>} : memref<1x8x32xf32, #tpu.memory_space<vmem>>, vector<1x8x32xf32>,
    return
  }
  func.func @transform_0(%arg0: i32, %arg1: i32) -> (i32, i32, i32) {
    %c0_i32 = arith.constant 0 : i32
    %c0_i32_0 = arith.constant 0 : i32
    return %arg0, %arg1, %c0_i32 : i32, i32, i32
  }
  func.func @transform_1(%arg0: i32, %arg1: i32) -> (i32, i32, i32, i32) {
    %c0_i32 = arith.constant 0 : i32
    %c0_i32_0 = arith.constant 0 : i32
    %c0_i32_1 = arith.constant 0 : i32
    %c0_i32_2 = arith.constant 0 : i32
    return %arg0, %c0_i32, %c0_i32_0, %c0_i32_1 : i32, i32, i32, i32
  }
  func.func @transform_2(%arg0: i32, %arg1: i32) -> (i32, i32, i32, i32) {
    %c0_i32 = arith.constant 0 : i32
    %c0_i32_0 = arith.constant 0 : i32
    %c0_i32_1 = arith.constant 0 : i32
    %c0_i32_2 = arith.constant 0 : i32
    return %arg0, %c0_i32, %c0_i32_0, %c0_i32_1 : i32, i32, i32, i32
  }
  func.func @transform_3(%arg0: i32, %arg1: i32) -> (i32, i32, i32) {
    %c0_i32 = arith.constant 0 : i32
    %c0_i32_0 = arith.constant 0 : i32
    %c0_i32_1 = arith.constant 0 : i32
    %c0_i32_2 = arith.constant 0 : i32
    return %c0_i32, %c0_i32_0, %c0_i32_1 : i32, i32, i32
  }
  func.func @transform_4(%arg0: i32, %arg1: i32) -> (i32, i32, i32) {
    %c0_i32 = arith.constant 0 : i32
    %c0_i32_0 = arith.constant 0 : i32
    %c0_i32_1 = arith.constant 0 : i32
    %c0_i32_2 = arith.constant 0 : i32
    return %c0_i32, %c0_i32_0, %c0_i32_1 : i32, i32, i32
  }
  func.func @transform_5(%arg0: i32, %arg1: i32) -> (i32, i32) {
    %c0_i32 = arith.constant 0 : i32
    %c0_i32_0 = arith.constant 0 : i32
    %c0_i32_1 = arith.constant 0 : i32
    return %c0_i32, %c0_i32_0 : i32, i32
  }
  func.func @transform_6(%arg0: i32, %arg1: i32) -> (i32, i32) {
    %c0_i32 = arith.constant 0 : i32
    %c0_i32_0 = arith.constant 0 : i32
    %c0_i32_1 = arith.constant 0 : i32
    return %c0_i32, %c0_i32_0 : i32, i32
  }
  func.func @transform_7(%arg0: i32, %arg1: i32) -> (i32, i32) {
    %c0_i32 = arith.constant 0 : i32
    %c0_i32_0 = arith.constant 0 : i32
    %c0_i32_1 = arith.constant 0 : i32
    return %c0_i32, %c0_i32_0 : i32, i32
  }
  func.func @transform_8(%arg0: i32, %arg1: i32) -> (i32, i32) {
    %c0_i32 = arith.constant 0 : i32
    %c0_i32_0 = arith.constant 0 : i32
    %c0_i32_1 = arith.constant 0 : i32
    return %c0_i32, %c0_i32_0 : i32, i32
  }
  func.func @transform_9(%arg0: i32, %arg1: i32) -> (i32, i32) {
    %c0_i32 = arith.constant 0 : i32
    %c0_i32_0 = arith.constant 0 : i32
    %c0_i32_1 = arith.constant 0 : i32
    return %c0_i32, %c0_i32_0 : i32, i32
  }
  func.func @transform_10(%arg0: i32, %arg1: i32) -> (i32, i32) {
    %c0_i32 = arith.constant 0 : i32
    %c0_i32_0 = arith.constant 0 : i32
    %c0_i32_1 = arith.constant 0 : i32
    return %c0_i32, %c0_i32_0 : i32, i32
  }
  func.func @transform_11(%arg0: i32, %arg1: i32) -> (i32, i32) {
    %c0_i32 = arith.constant 0 : i32
    %c0_i32_0 = arith.constant 0 : i32
    %c0_i32_1 = arith.constant 0 : i32
    return %c0_i32, %c0_i32_0 : i32, i32
  }
  func.func @transform_12(%arg0: i32, %arg1: i32) -> (i32, i32) {
    %c0_i32 = arith.constant 0 : i32
    %c0_i32_0 = arith.constant 0 : i32
    %c0_i32_1 = arith.constant 0 : i32
    return %c0_i32, %c0_i32_0 : i32, i32
  }
  func.func @transform_13(%arg0: i32, %arg1: i32) -> (i32, i32) {
    %c0_i32 = arith.constant 0 : i32
    %c0_i32_0 = arith.constant 0 : i32
    %c0_i32_1 = arith.constant 0 : i32
    return %c0_i32, %c0_i32_0 : i32, i32
  }
  func.func @transform_14(%arg0: i32, %arg1: i32) -> (i32, i32) {
    %c0_i32 = arith.constant 0 : i32
    %c0_i32_0 = arith.constant 0 : i32
    %c0_i32_1 = arith.constant 0 : i32
    return %c0_i32, %c0_i32_0 : i32, i32
  }
  func.func @transform_15(%arg0: i32, %arg1: i32) -> (i32, i32, i32) {
    %c0_i32 = arith.constant 0 : i32
    %c0_i32_0 = arith.constant 0 : i32
    return %arg0, %arg1, %c0_i32 : i32, i32, i32
  }
}

</mosaic_0001>

<llo_original>
// kernel: tpu_custom_call.1
$region0: #{tpu_custom_call.1}
  #allocation0 [shape = 'u32[]', space=smem, size = 0x4, offset = 0x4, fixed_abs, tag = 'smem constant byte address 0x4 - core index']
  #allocation1 [shape = 'u32[72,128]{1,0:T(1,128)}', space=vmem, size = 0x9000, scoped, tag = 'internal scratch']
  #allocation2 [shape = 'bf16[8,32]{1,0:T(8,128)(2,1)}', space=vmem, size = 0x800, scoped, tag = 'scratch operand']
  %s0 = inlined_call_operand.vmem [shape: bf16[2,8,32], index: 0, kind: input, shape index: {}]
  %s1 = inlined_call_operand.vmem [shape: bf16[2,4,12,8], index: 1, kind: input, shape index: {}]
  %s2 = inlined_call_operand.vmem [shape: bf16[2,4,12,8], index: 2, kind: input, shape index: {}]
  %s3 = inlined_call_operand.vmem [shape: bf16[4,32,8], index: 3, kind: input, shape index: {}]
  %s4 = inlined_call_operand.vmem [shape: f32[4,1,8], index: 4, kind: input, shape index: {}]
  %s5 = inlined_call_operand.vmem [shape: bf16[32,32], index: 5, kind: input, shape index: {}]
  %s6 = inlined_call_operand.vmem [shape: f32[1,32], index: 6, kind: input, shape index: {}]
  %s7 = inlined_call_operand.vmem [shape: f32[1,32], index: 7, kind: input, shape index: {}]
  %s8 = inlined_call_operand.vmem [shape: f32[1,32], index: 8, kind: input, shape index: {}]
  %s9 = inlined_call_operand.vmem [shape: bf16[32,128], index: 9, kind: input, shape index: {}]
  %s10 = inlined_call_operand.vmem [shape: f32[1,128], index: 10, kind: input, shape index: {}]
  %s11 = inlined_call_operand.vmem [shape: bf16[128,32], index: 11, kind: input, shape index: {}]
  %s12 = inlined_call_operand.vmem [shape: f32[1,32], index: 12, kind: input, shape index: {}]
  %s13 = inlined_call_operand.vmem [shape: f32[1,32], index: 13, kind: input, shape index: {}]
  %s14 = inlined_call_operand.vmem [shape: f32[1,32], index: 14, kind: input, shape index: {}]
  %s15 = inlined_call_operand.hbm [shape: f32[2,8,32], index: 15, kind: output, shape index: {}]
  %s16 = sld [smem:[#allocation0]]
  $region93: #{tpu_custom_call.1} parent=0
    _
  %s18 = ssub.s32 1, %s16
  %s19 = scalar_select 0, %s18, %s16
  $region1: #{tpu_custom_call.1} parent=0
    #allocation3 [shape = 'u8[8192]{0}', space=vmem, size = 0x2000, scoped, tag = 'output window, operand 0']
    #allocation4 [shape = 's32[2]{0}', space=sflag, size = 0x8, scoped, tag = 'scoped memory for tpu_custom_call.1']
    %20 = vsyncpa [#allocation4], 0
    %s21 = scalar_lea.sflag [#allocation4], 1
    %22 = vsyncpa %s21, 0
    loop: start=0, step=1, limit=4
    $region2: #{tpu_custom_call.1} parent=1 // loop_pre_header
      _
    $region3: #{tpu_custom_call.1} parent=1 // loop_header
      %s24 = sphi 0, %s28
      %p25 = scmp.ge.s32.totalorder %s24, 4
      %s31 = sphi 0, %s43
      %s32 = sphi 0, %s39
      %s33 = sphi 0, %s31
      %s34 = sphi 0, %s32
      %s35 = sphi 0, %s33
      %s36 = sphi 0, %s34
      %s48 = sphi 0, %s50
      %s51 = sphi 0, %s48
      %s52 = sphi 0, %s51
      %s68 = sphi 0, %s52
      %s74 = sphi 0, %s76
      %s77 = sphi 0, %s74
      %s78 = sphi 0, %s77
      %s94 = sphi 0, %s78
      %s100 = sphi 0, %s102
      %s103 = sphi 0, %s100
      %s104 = sphi 0, %s103
      %s120 = sphi 0, %s104
      %s124 = sphi 0, %s124
      %s126 = sphi 0, %s124
      %s127 = sphi 0, %s126
      %s141 = sphi 0, %s127
      %s145 = sphi 0, %s145
      %s147 = sphi 0, %s145
      %s148 = sphi 0, %s147
      %s162 = sphi 0, %s148
      %s166 = sphi 0, %s166
      %s168 = sphi 0, %s166
      %s169 = sphi 0, %s168
      %s183 = sphi 0, %s169
      %s187 = sphi 0, %s187
      %s189 = sphi 0, %s187
      %s190 = sphi 0, %s189
      %s204 = sphi 0, %s190
      %s208 = sphi 0, %s208
      %s210 = sphi 0, %s208
      %s211 = sphi 0, %s210
      %s225 = sphi 0, %s211
      %s229 = sphi 0, %s229
      %s231 = sphi 0, %s229
      %s232 = sphi 0, %s231
      %s246 = sphi 0, %s232
      %s250 = sphi 0, %s250
      %s252 = sphi 0, %s250
      %s253 = sphi 0, %s252
      %s267 = sphi 0, %s253
      %s271 = sphi 0, %s271
      %s273 = sphi 0, %s271
      %s274 = sphi 0, %s273
      %s288 = sphi 0, %s274
      %s292 = sphi 0, %s292
      %s294 = sphi 0, %s292
      %s295 = sphi 0, %s294
      %s309 = sphi 0, %s295
      %s313 = sphi 0, %s313
      %s315 = sphi 0, %s313
      %s316 = sphi 0, %s315
      %s330 = sphi 0, %s316
      %s334 = sphi 0, %s334
      %s336 = sphi 0, %s334
      %s337 = sphi 0, %s336
      %s351 = sphi 0, %s337
      %s355 = sphi 0, %s355
      %s357 = sphi 0, %s355
      %s358 = sphi 0, %s357
      %s372 = sphi 0, %s358
      %s380 = sphi 0, %s382
      %s383 = sphi 0, %s380
      %s384 = sphi 0, %s383
      %s400 = sphi 0, %s384
    $region4: #{tpu_custom_call.1} parent=1 // loop_header_branch
      %27 = sbr.rel (%p25) target = $region8
    $region5: #{tpu_custom_call.1} parent=1 // loop_body
      %s29 = ssub.s32 %s24, 1
      %s30 = ssub.s32 %s24, 2
      %s37 = sadd.s32 1, %s32
      %p38 = scmp.ge.s32.totalorder %s37, 1
      %s39 = scalar_select %p38, 0, %s37
      %s40 = sadd.s32 1, %s31
      %s41 = scalar_select %p38, %s40, %s31
      %p42 = scmp.ge.s32.totalorder %s41, 2
      %s43 = scalar_select %p42, 0, %s41
      %s44 = ssub.s32 %s31, %s43
      %s45 = ssub.s32 %s32, %s39
      %s46 = sor.u32 %s44, %s45
      %p47 = scmp.eq.s32.totalorder %s46, 0
      %s49 = sadd.s32 %s48, 1
      %s50 = scalar_select %p47, %s48, %s49
      %p53 = pneg %p47
      %p54 = scmp.eq.s32.totalorder %s24, 1
      %p55 = por %p53, %p54
      %p56 = scmp.ne.s32.totalorder %s48, %s51
      %p57 = scmp.eq.s32.totalorder %s24, 0
      %p58 = por %p56, %p57
      %p59 = scmp.ne.s32.totalorder %s48, %s51
      %p60 = scmp.eq.s32.totalorder %s29, 1
      %p61 = por %p59, %p60
      %p62 = scmp.ne.s32.totalorder %s51, %s52
      %p63 = scmp.eq.s32.totalorder %s29, 0
      %p64 = por %p62, %p63
      %p65 = scmp.ne.s32.totalorder %s51, %s52
      %p66 = scmp.eq.s32.totalorder %s30, 1
      %p67 = por %p65, %p66
      %p69 = scmp.ne.s32.totalorder %s52, %s68
      %p70 = scmp.eq.s32.totalorder %s30, 0
      %p71 = por %p69, %p70
      %s72 = ssub.s32 %s31, %s43
      %p73 = scmp.eq.s32.totalorder %s72, 0
      %s75 = sadd.s32 %s74, 1
      %s76 = scalar_select %p73, %s74, %s75
      %p79 = pneg %p73
      %p80 = scmp.eq.s32.totalorder %s24, 1
      %p81 = por %p79, %p80
      %p82 = scmp.ne.s32.totalorder %s74, %s77
      %p83 = scmp.eq.s32.totalorder %s24, 0
      %p84 = por %p82, %p83
      %p85 = scmp.ne.s32.totalorder %s74, %s77
      %p86 = scmp.eq.s32.totalorder %s29, 1
      %p87 = por %p85, %p86
      %p88 = scmp.ne.s32.totalorder %s77, %s78
      %p89 = scmp.eq.s32.totalorder %s29, 0
      %p90 = por %p88, %p89
      %p91 = scmp.ne.s32.totalorder %s77, %s78
      %p92 = scmp.eq.s32.totalorder %s30, 1
      %p93 = por %p91, %p92
      %p95 = scmp.ne.s32.totalorder %s78, %s94
      %p96 = scmp.eq.s32.totalorder %s30, 0
      %p97 = por %p95, %p96
      %s98 = ssub.s32 %s31, %s43
      %p99 = scmp.eq.s32.totalorder %s98, 0
      %s101 = sadd.s32 %s100, 1
      %s102 = scalar_select %p99, %s100, %s101
      %p105 = pneg %p99
      %p106 = scmp.eq.s32.totalorder %s24, 1
      %p107 = por %p105, %p106
      %p108 = scmp.ne.s32.totalorder %s100, %s103
      %p109 = scmp.eq.s32.totalorder %s24, 0
      %p110 = por %p108, %p109
      %p111 = scmp.ne.s32.totalorder %s100, %s103
      %p112 = scmp.eq.s32.totalorder %s29, 1
      %p113 = por %p111, %p112
      %p114 = scmp.ne.s32.totalorder %s103, %s104
      %p115 = scmp.eq.s32.totalorder %s29, 0
      %p116 = por %p114, %p115
      %p117 = scmp.ne.s32.totalorder %s103, %s104
      %p118 = scmp.eq.s32.totalorder %s30, 1
      %p119 = por %p117, %p118
      %p121 = scmp.ne.s32.totalorder %s104, %s120
      %p122 = scmp.eq.s32.totalorder %s30, 0
      %p123 = por %p121, %p122
      %s125 = sadd.s32 %s124, 1
      %p128 = scmp.eq.s32.totalorder %s24, 1
      %p129 = scmp.ne.s32.totalorder %s124, %s126
      %p130 = scmp.eq.s32.totalorder %s24, 0
      %p131 = por %p129, %p130
      %p132 = scmp.ne.s32.totalorder %s124, %s126
      %p133 = scmp.eq.s32.totalorder %s29, 1
      %p134 = por %p132, %p133
      %p135 = scmp.ne.s32.totalorder %s126, %s127
      %p136 = scmp.eq.s32.totalorder %s29, 0
      %p137 = por %p135, %p136
      %p138 = scmp.ne.s32.totalorder %s126, %s127
      %p139 = scmp.eq.s32.totalorder %s30, 1
      %p140 = por %p138, %p139
      %p142 = scmp.ne.s32.totalorder %s127, %s141
      %p143 = scmp.eq.s32.totalorder %s30, 0
      %p144 = por %p142, %p143
      %s146 = sadd.s32 %s145, 1
      %p149 = scmp.eq.s32.totalorder %s24, 1
      %p150 = scmp.ne.s32.totalorder %s145, %s147
      %p151 = scmp.eq.s32.totalorder %s24, 0
      %p152 = por %p150, %p151
      %p153 = scmp.ne.s32.totalorder %s145, %s147
      %p154 = scmp.eq.s32.totalorder %s29, 1
      %p155 = por %p153, %p154
      %p156 = scmp.ne.s32.totalorder %s147, %s148
      %p157 = scmp.eq.s32.totalorder %s29, 0
      %p158 = por %p156, %p157
      %p159 = scmp.ne.s32.totalorder %s147, %s148
      %p160 = scmp.eq.s32.totalorder %s30, 1
      %p161 = por %p159, %p160
      %p163 = scmp.ne.s32.totalorder %s148, %s162
      %p164 = scmp.eq.s32.totalorder %s30, 0
      %p165 = por %p163, %p164
      %s167 = sadd.s32 %s166, 1
      %p170 = scmp.eq.s32.totalorder %s24, 1
      %p171 = scmp.ne.s32.totalorder %s166, %s168
      %p172 = scmp.eq.s32.totalorder %s24, 0
      %p173 = por %p171, %p172
      %p174 = scmp.ne.s32.totalorder %s166, %s168
      %p175 = scmp.eq.s32.totalorder %s29, 1
      %p176 = por %p174, %p175
      %p177 = scmp.ne.s32.totalorder %s168, %s169
      %p178 = scmp.eq.s32.totalorder %s29, 0
      %p179 = por %p177, %p178
      %p180 = scmp.ne.s32.totalorder %s168, %s169
      %p181 = scmp.eq.s32.totalorder %s30, 1
      %p182 = por %p180, %p181
      %p184 = scmp.ne.s32.totalorder %s169, %s183
      %p185 = scmp.eq.s32.totalorder %s30, 0
      %p186 = por %p184, %p185
      %s188 = sadd.s32 %s187, 1
      %p191 = scmp.eq.s32.totalorder %s24, 1
      %p192 = scmp.ne.s32.totalorder %s187, %s189
      %p193 = scmp.eq.s32.totalorder %s24, 0
      %p194 = por %p192, %p193
      %p195 = scmp.ne.s32.totalorder %s187, %s189
      %p196 = scmp.eq.s32.totalorder %s29, 1
      %p197 = por %p195, %p196
      %p198 = scmp.ne.s32.totalorder %s189, %s190
      %p199 = scmp.eq.s32.totalorder %s29, 0
      %p200 = por %p198, %p199
      %p201 = scmp.ne.s32.totalorder %s189, %s190
      %p202 = scmp.eq.s32.totalorder %s30, 1
      %p203 = por %p201, %p202
      %p205 = scmp.ne.s32.totalorder %s190, %s204
      %p206 = scmp.eq.s32.totalorder %s30, 0
      %p207 = por %p205, %p206
      %s209 = sadd.s32 %s208, 1
      %p212 = scmp.eq.s32.totalorder %s24, 1
      %p213 = scmp.ne.s32.totalorder %s208, %s210
      %p214 = scmp.eq.s32.totalorder %s24, 0
      %p215 = por %p213, %p214
      %p216 = scmp.ne.s32.totalorder %s208, %s210
      %p217 = scmp.eq.s32.totalorder %s29, 1
      %p218 = por %p216, %p217
      %p219 = scmp.ne.s32.totalorder %s210, %s211
      %p220 = scmp.eq.s32.totalorder %s29, 0
      %p221 = por %p219, %p220
      %p222 = scmp.ne.s32.totalorder %s210, %s211
      %p223 = scmp.eq.s32.totalorder %s30, 1
      %p224 = por %p222, %p223
      %p226 = scmp.ne.s32.totalorder %s211, %s225
      %p227 = scmp.eq.s32.totalorder %s30, 0
      %p228 = por %p226, %p227
      %s230 = sadd.s32 %s229, 1
      %p233 = scmp.eq.s32.totalorder %s24, 1
      %p234 = scmp.ne.s32.totalorder %s229, %s231
      %p235 = scmp.eq.s32.totalorder %s24, 0
      %p236 = por %p234, %p235
      %p237 = scmp.ne.s32.totalorder %s229, %s231
      %p238 = scmp.eq.s32.totalorder %s29, 1
      %p239 = por %p237, %p238
      %p240 = scmp.ne.s32.totalorder %s231, %s232
      %p241 = scmp.eq.s32.totalorder %s29, 0
      %p242 = por %p240, %p241
      %p243 = scmp.ne.s32.totalorder %s231, %s232
      %p244 = scmp.eq.s32.totalorder %s30, 1
      %p245 = por %p243, %p244
      %p247 = scmp.ne.s32.totalorder %s232, %s246
      %p248 = scmp.eq.s32.totalorder %s30, 0
      %p249 = por %p247, %p248
      %s251 = sadd.s32 %s250, 1
      %p254 = scmp.eq.s32.totalorder %s24, 1
      %p255 = scmp.ne.s32.totalorder %s250, %s252
      %p256 = scmp.eq.s32.totalorder %s24, 0
      %p257 = por %p255, %p256
      %p258 = scmp.ne.s32.totalorder %s250, %s252
      %p259 = scmp.eq.s32.totalorder %s29, 1
      %p260 = por %p258, %p259
      %p261 = scmp.ne.s32.totalorder %s252, %s253
      %p262 = scmp.eq.s32.totalorder %s29, 0
      %p263 = por %p261, %p262
      %p264 = scmp.ne.s32.totalorder %s252, %s253
      %p265 = scmp.eq.s32.totalorder %s30, 1
      %p266 = por %p264, %p265
      %p268 = scmp.ne.s32.totalorder %s253, %s267
      %p269 = scmp.eq.s32.totalorder %s30, 0
      %p270 = por %p268, %p269
      %s272 = sadd.s32 %s271, 1
      %p275 = scmp.eq.s32.totalorder %s24, 1
      %p276 = scmp.ne.s32.totalorder %s271, %s273
      %p277 = scmp.eq.s32.totalorder %s24, 0
      %p278 = por %p276, %p277
      %p279 = scmp.ne.s32.totalorder %s271, %s273
      %p280 = scmp.eq.s32.totalorder %s29, 1
      %p281 = por %p279, %p280
      %p282 = scmp.ne.s32.totalorder %s273, %s274
      %p283 = scmp.eq.s32.totalorder %s29, 0
      %p284 = por %p282, %p283
      %p285 = scmp.ne.s32.totalorder %s273, %s274
      %p286 = scmp.eq.s32.totalorder %s30, 1
      %p287 = por %p285, %p286
      %p289 = scmp.ne.s32.totalorder %s274, %s288
      %p290 = scmp.eq.s32.totalorder %s30, 0
      %p291 = por %p289, %p290
      %s293 = sadd.s32 %s292, 1
      %p296 = scmp.eq.s32.totalorder %s24, 1
      %p297 = scmp.ne.s32.totalorder %s292, %s294
      %p298 = scmp.eq.s32.totalorder %s24, 0
      %p299 = por %p297, %p298
      %p300 = scmp.ne.s32.totalorder %s292, %s294
      %p301 = scmp.eq.s32.totalorder %s29, 1
      %p302 = por %p300, %p301
      %p303 = scmp.ne.s32.totalorder %s294, %s295
      %p304 = scmp.eq.s32.totalorder %s29, 0
      %p305 = por %p303, %p304
      %p306 = scmp.ne.s32.totalorder %s294, %s295
      %p307 = scmp.eq.s32.totalorder %s30, 1
      %p308 = por %p306, %p307
      %p310 = scmp.ne.s32.totalorder %s295, %s309
      %p311 = scmp.eq.s32.totalorder %s30, 0
      %p312 = por %p310, %p311
      %s314 = sadd.s32 %s313, 1
      %p317 = scmp.eq.s32.totalorder %s24, 1
      %p318 = scmp.ne.s32.totalorder %s313, %s315
      %p319 = scmp.eq.s32.totalorder %s24, 0
      %p320 = por %p318, %p319
      %p321 = scmp.ne.s32.totalorder %s313, %s315
      %p322 = scmp.eq.s32.totalorder %s29, 1
      %p323 = por %p321, %p322
      %p324 = scmp.ne.s32.totalorder %s315, %s316
      %p325 = scmp.eq.s32.totalorder %s29, 0
      %p326 = por %p324, %p325
      %p327 = scmp.ne.s32.totalorder %s315, %s316
      %p328 = scmp.eq.s32.totalorder %s30, 1
      %p329 = por %p327, %p328
      %p331 = scmp.ne.s32.totalorder %s316, %s330
      %p332 = scmp.eq.s32.totalorder %s30, 0
      %p333 = por %p331, %p332
      %s335 = sadd.s32 %s334, 1
      %p338 = scmp.eq.s32.totalorder %s24, 1
      %p339 = scmp.ne.s32.totalorder %s334, %s336
      %p340 = scmp.eq.s32.totalorder %s24, 0
      %p341 = por %p339, %p340
      %p342 = scmp.ne.s32.totalorder %s334, %s336
      %p343 = scmp.eq.s32.totalorder %s29, 1
      %p344 = por %p342, %p343
      %p345 = scmp.ne.s32.totalorder %s336, %s337
      %p346 = scmp.eq.s32.totalorder %s29, 0
      %p347 = por %p345, %p346
      %p348 = scmp.ne.s32.totalorder %s336, %s337
      %p349 = scmp.eq.s32.totalorder %s30, 1
      %p350 = por %p348, %p349
      %p352 = scmp.ne.s32.totalorder %s337, %s351
      %p353 = scmp.eq.s32.totalorder %s30, 0
      %p354 = por %p352, %p353
      %s356 = sadd.s32 %s355, 1
      %p359 = scmp.eq.s32.totalorder %s24, 1
      %p360 = scmp.ne.s32.totalorder %s355, %s357
      %p361 = scmp.eq.s32.totalorder %s24, 0
      %p362 = por %p360, %p361
      %p363 = scmp.ne.s32.totalorder %s355, %s357
      %p364 = scmp.eq.s32.totalorder %s29, 1
      %p365 = por %p363, %p364
      %p366 = scmp.ne.s32.totalorder %s357, %s358
      %p367 = scmp.eq.s32.totalorder %s29, 0
      %p368 = por %p366, %p367
      %p369 = scmp.ne.s32.totalorder %s357, %s358
      %p370 = scmp.eq.s32.totalorder %s30, 1
      %p371 = por %p369, %p370
      %p373 = scmp.ne.s32.totalorder %s358, %s372
      %p374 = scmp.eq.s32.totalorder %s30, 0
      %p375 = por %p373, %p374
      %s376 = ssub.s32 %s31, %s43
      %s377 = ssub.s32 %s32, %s39
      %s378 = sor.u32 %s376, %s377
      %p379 = scmp.eq.s32.totalorder %s378, 0
      %s381 = sadd.s32 %s380, 1
      %s382 = scalar_select %p379, %s380, %s381
      %p385 = pneg %p379
      %p386 = scmp.eq.s32.totalorder %s24, 1
      %p387 = por %p385, %p386
      %p388 = scmp.ne.s32.totalorder %s380, %s383
      %p389 = scmp.eq.s32.totalorder %s24, 0
      %p390 = por %p388, %p389
      %p391 = scmp.ne.s32.totalorder %s380, %s383
      %p392 = scmp.eq.s32.totalorder %s29, 1
      %p393 = por %p391, %p392
      %p394 = scmp.ne.s32.totalorder %s383, %s384
      %p395 = scmp.eq.s32.totalorder %s29, 0
      %p396 = por %p394, %p395
      %p397 = scmp.ne.s32.totalorder %s383, %s384
      %p398 = scmp.eq.s32.totalorder %s30, 1
      %p399 = por %p397, %p398
      %p401 = scmp.ne.s32.totalorder %s384, %s400
      %p402 = scmp.eq.s32.totalorder %s30, 0
      %p403 = por %p401, %p402
      %p404 = scmp.le.s32.totalorder 1, %s24
      %p405 = scmp.lt.s32.totalorder %s24, 3
      %p406 = pnand %p404, %p405
      %p407 = pneg %p406
      // Predicated region
      $region9: #{tpu_custom_call.1} parent=5 // pred_check
        _
      $region10: #{tpu_custom_call.1} parent=5 // pred_check_branch
        %409 = sbr.rel (%p406) target = $region12
      $region11: #{tpu_custom_call.1} parent=5 // pred_region
        %s410 = ssub.s32 %s24, 1
        // Predicated region
        $region13: #{tpu_custom_call.1} parent=11 // pred_check
          %p411 = pneg %p137
        $region14: #{tpu_custom_call.1} parent=11 // pred_check_branch
          %413 = sbr.rel (%p411) target = $region16
        $region15: #{tpu_custom_call.1} parent=11 // pred_region
          _
        $region16: #{tpu_custom_call.1} parent=11 // pred_fallthru
          _
        // Predicated region
        $region17: #{tpu_custom_call.1} parent=11 // pred_check
          %p414 = pneg %p158
        $region18: #{tpu_custom_call.1} parent=11 // pred_check_branch
          %416 = sbr.rel (%p414) target = $region20
        $region19: #{tpu_custom_call.1} parent=11 // pred_region
          _
        $region20: #{tpu_custom_call.1} parent=11 // pred_fallthru
          _
        // Predicated region
        $region21: #{tpu_custom_call.1} parent=11 // pred_check
          %p417 = pneg %p179
        $region22: #{tpu_custom_call.1} parent=11 // pred_check_branch
          %419 = sbr.rel (%p417) target = $region24
        $region23: #{tpu_custom_call.1} parent=11 // pred_region
          _
        $region24: #{tpu_custom_call.1} parent=11 // pred_fallthru
          _
        // Predicated region
        $region25: #{tpu_custom_call.1} parent=11 // pred_check
          %p420 = pneg %p200
        $region26: #{tpu_custom_call.1} parent=11 // pred_check_branch
          %422 = sbr.rel (%p420) target = $region28
        $region27: #{tpu_custom_call.1} parent=11 // pred_region
          _
        $region28: #{tpu_custom_call.1} parent=11 // pred_fallthru
          _
        // Predicated region
        $region29: #{tpu_custom_call.1} parent=11 // pred_check
          %p423 = pneg %p221
        $region30: #{tpu_custom_call.1} parent=11 // pred_check_branch
          %425 = sbr.rel (%p423) target = $region32
        $region31: #{tpu_custom_call.1} parent=11 // pred_region
          _
        $region32: #{tpu_custom_call.1} parent=11 // pred_fallthru
          _
        // Predicated region
        $region33: #{tpu_custom_call.1} parent=11 // pred_check
          %p426 = pneg %p242
        $region34: #{tpu_custom_call.1} parent=11 // pred_check_branch
          %428 = sbr.rel (%p426) target = $region36
        $region35: #{tpu_custom_call.1} parent=11 // pred_region
          _
        $region36: #{tpu_custom_call.1} parent=11 // pred_fallthru
          _
        // Predicated region
        $region37: #{tpu_custom_call.1} parent=11 // pred_check
          %p429 = pneg %p263
        $region38: #{tpu_custom_call.1} parent=11 // pred_check_branch
          %431 = sbr.rel (%p429) target = $region40
        $region39: #{tpu_custom_call.1} parent=11 // pred_region
          _
        $region40: #{tpu_custom_call.1} parent=11 // pred_fallthru
          _
        // Predicated region
        $region41: #{tpu_custom_call.1} parent=11 // pred_check
          %p432 = pneg %p284
        $region42: #{tpu_custom_call.1} parent=11 // pred_check_branch
          %434 = sbr.rel (%p432) target = $region44
        $region43: #{tpu_custom_call.1} parent=11 // pred_region
          _
        $region44: #{tpu_custom_call.1} parent=11 // pred_fallthru
          _
        // Predicated region
        $region45: #{tpu_custom_call.1} parent=11 // pred_check
          %p435 = pneg %p305
        $region46: #{tpu_custom_call.1} parent=11 // pred_check_branch
          %437 = sbr.rel (%p435) target = $region48
        $region47: #{tpu_custom_call.1} parent=11 // pred_region
          _
        $region48: #{tpu_custom_call.1} parent=11 // pred_fallthru
          _
        // Predicated region
        $region49: #{tpu_custom_call.1} parent=11 // pred_check
          %p438 = pneg %p326
        $region50: #{tpu_custom_call.1} parent=11 // pred_check_branch
          %440 = sbr.rel (%p438) target = $region52
        $region51: #{tpu_custom_call.1} parent=11 // pred_region
          _
        $region52: #{tpu_custom_call.1} parent=11 // pred_fallthru
          _
        // Predicated region
        $region53: #{tpu_custom_call.1} parent=11 // pred_check
          %p441 = pneg %p347
        $region54: #{tpu_custom_call.1} parent=11 // pred_check_branch
          %443 = sbr.rel (%p441) target = $region56
        $region55: #{tpu_custom_call.1} parent=11 // pred_region
          _
        $region56: #{tpu_custom_call.1} parent=11 // pred_fallthru
          _
        // Predicated region
        $region57: #{tpu_custom_call.1} parent=11 // pred_check
          %p444 = pneg %p368
        $region58: #{tpu_custom_call.1} parent=11 // pred_check_branch
          %446 = sbr.rel (%p444) target = $region60
        $region59: #{tpu_custom_call.1} parent=11 // pred_region
          _
        $region60: #{tpu_custom_call.1} parent=11 // pred_fallthru
          _
      $region12: #{tpu_custom_call.1} parent=5 // pred_fallthru
        _
      %p447 = scmp.lt.s32.totalorder %s24, 2
      // Predicated region
      $region61: #{tpu_custom_call.1} parent=5 // pred_check
        %p448 = pneg %p447
      $region62: #{tpu_custom_call.1} parent=5 // pred_check_branch
        %450 = sbr.rel (%p448) target = $region64
      $region63: #{tpu_custom_call.1} parent=5 // pred_region
        // Predicated region
        $region65: #{tpu_custom_call.1} parent=63 // pred_check
          %p451 = pneg %p58
        $region66: #{tpu_custom_call.1} parent=63 // pred_check_branch
          %453 = sbr.rel (%p451) target = $region68
        $region67: #{tpu_custom_call.1} parent=63 // pred_region
          %p454 = scmp.lt.s32.totalorder %s31, 1
          %s455 = scalar_select %p454, %s31, 1
          %p456 = scmp.lt.s32.totalorder %s32, 0
          %s457 = scalar_select %p456, %s32, 0
          %s458 = sadd.s32 %s457, %s455
          %s459 = smul.addr %s458, 4
          %s460 = scalar_lea.vmem %s0, %s459
        $region68: #{tpu_custom_call.1} parent=63 // pred_fallthru
          _
        // Predicated region
        $region69: #{tpu_custom_call.1} parent=63 // pred_check
          %p461 = pneg %p84
        $region70: #{tpu_custom_call.1} parent=63 // pred_check_branch
          %463 = sbr.rel (%p461) target = $region72
        $region71: #{tpu_custom_call.1} parent=63 // pred_region
          %p464 = scmp.lt.s32.totalorder %s31, 1
          %s465 = scalar_select %p464, %s31, 1
          %s466 = smul.addr %s465, 8
          %s467 = smul.addr %s466, 4
          %s468 = scalar_lea.vmem %s1, %s467
        $region72: #{tpu_custom_call.1} parent=63 // pred_fallthru
          _
        // Predicated region
        $region73: #{tpu_custom_call.1} parent=63 // pred_check
          %p469 = pneg %p110
        $region74: #{tpu_custom_call.1} parent=63 // pred_check_branch
          %471 = sbr.rel (%p469) target = $region76
        $region75: #{tpu_custom_call.1} parent=63 // pred_region
          %p472 = scmp.lt.s32.totalorder %s31, 1
          %s473 = scalar_select %p472, %s31, 1
          %s474 = smul.addr %s473, 8
          %s475 = smul.addr %s474, 4
          %s476 = scalar_lea.vmem %s2, %s475
        $region76: #{tpu_custom_call.1} parent=63 // pred_fallthru
          _
      $region64: #{tpu_custom_call.1} parent=5 // pred_fallthru
        _
      %p477 = scmp.le.s32.totalorder 1, %s24
      %p478 = scmp.lt.s32.totalorder %s24, 3
      %p479 = pnand %p477, %p478
      %p480 = pneg %p479
      // Predicated region
      $region77: #{tpu_custom_call.1} parent=5 // pred_check
        _
      $region78: #{tpu_custom_call.1} parent=5 // pred_check_branch
        %482 = sbr.rel (%p479) target = $region80
      $region79: #{tpu_custom_call.1} parent=5 // pred_region
        %s483 = ssub.s32 %s24, 1
        %p484 = scmp.lt.s32.totalorder %s33, 1
        %s485 = scalar_select %p484, %s33, 1
        %p486 = scmp.lt.s32.totalorder %s34, 0
        %s487 = scalar_select %p486, %s34, 0
        %s488 = sadd.s32 %s487, %s485
        %s489 = smul.addr %s488, 4
        %s490 = scalar_lea.vmem %s0, %s489
        %p491 = pneg %p64
        %p492 = pneg %p61
        %p493 = scmp.lt.s32.totalorder %s33, 1
        %s494 = scalar_select %p493, %s33, 1
        %s495 = smul.addr %s494, 8
        %s496 = smul.addr %s495, 4
        %s497 = scalar_lea.vmem %s1, %s496
        %p498 = pneg %p90
        %p499 = pneg %p87
        %p500 = scmp.lt.s32.totalorder %s33, 1
        %s501 = scalar_select %p500, %s33, 1
        %s502 = smul.addr %s501, 8
        %s503 = smul.addr %s502, 4
        %s504 = scalar_lea.vmem %s2, %s503
        %p505 = pneg %p116
        %p506 = pneg %p113
        %p507 = pneg %p137
        %p508 = pneg %p134
        %p509 = pneg %p158
        %p510 = pneg %p155
        %p511 = pneg %p179
        %p512 = pneg %p176
        %p513 = pneg %p200
        %p514 = pneg %p197
        %p515 = pneg %p221
        %p516 = pneg %p218
        %p517 = pneg %p242
        %p518 = pneg %p239
        %p519 = pneg %p263
        %p520 = pneg %p260
        %p521 = pneg %p284
        %p522 = pneg %p281
        %p523 = pneg %p305
        %p524 = pneg %p302
        %p525 = pneg %p326
        %p526 = pneg %p323
        %p527 = pneg %p347
        %p528 = pneg %p344
        %p529 = pneg %p368
        %p530 = pneg %p365
        %p531 = pneg %p396
        %p532 = pneg %p393
        %s533 = sand.u32 %s383, 1
        %s534 = scalar_lea.sflag [#allocation4], %s533
        %s535 = sand.u32 %s383, 1
        %s536 = smul.addr %s535, 8
        %s537 = scalar_lea.vmem [#allocation3], %s536
        %p538 = scmp.lt.s32.totalorder %s33, 1
        %s539 = scalar_select %p538, %s33, 1
        %p540 = scmp.lt.s32.totalorder %s34, 0
        %s541 = scalar_select %p540, %s34, 0
        %s542 = sadd.s32 %s541, %s539
        %s543 = smul.addr %s542, 4
        %s544 = scalar_lea.vmem %s0, %s543
        %p545 = scmp.lt.s32.totalorder %s33, 1
        %s546 = scalar_select %p545, %s33, 1
        %s547 = smul.addr %s546, 8
        %s548 = smul.addr %s547, 4
        %s549 = scalar_lea.vmem %s1, %s548
        %p550 = scmp.lt.s32.totalorder %s33, 1
        %s551 = scalar_select %p550, %s33, 1
        %s552 = smul.addr %s551, 8
        %s553 = smul.addr %s552, 4
        %s554 = scalar_lea.vmem %s2, %s553
        %v556 = vld [vmem:[%s544] sm:$0xf]
        %v557 = vld [vmem:[%s3] sm:$0xf]
        %v558 = vld [vmem:[%s3 + $0x4] sm:$0xf]
        %v559 = vld [vmem:[%s3 + $0x8] sm:$0xf]
        %v560 = vld [vmem:[%s3 + $0xc] sm:$0xf]
        %v561 = vld [vmem:[%s4] sm:$0x1]
        %v563 = vperm.slane %v561, 0
        %v569 = vunpack.c.l.b16 %v557
        %v570 = vunpack.c.l.b16 %v558
        %v571 = vunpack.c.l.b16 %v559
        %v572 = vunpack.c.l.b16 %v560
        %v573 = vpack.c.b16 %v570, %v569
        %v574 = vpack.c.b16 %v572, %v571
        %vm577 = vcmask 261120
        %v579 = vsel %vm577, %v556, 0
        %581 = vmatpush.bf16.msra.mxu0 0
        %582 = vmatpush.bf16.msra.mxu0 0
        %583 = vmatpush.bf16.msra.mxu0 0
        %584 = vmatpush.bf16.msra.mxu0 0
        %585 = vmatpush.bf16.msra.mxu0 0
        %586 = vmatpush.bf16.msra.mxu0 0
        %587 = vmatpush.bf16.msra.mxu0 %v574
        %588 = vmatpush.bf16.msra.mxu0 %v573
        %589 = vmatmul.bf16.gmra.mxu0 %v579
        %v590 = vpop.f32.mrf.mxu0
        %v591 = vadd.f32 %v563, %v590
        %v592 = vpop.f32.mrf.mxu0
        %593 = vdwg.mxu0
        %v594 = vpack.c.bf16 %v591, %v591
        %v595 = vld [vmem:[%s549] sm:$0xf]
        %v596 = vld [vmem:[%s549 + $0x4] sm:$0x3]
        %v597 = vld [vmem:[%s554] sm:$0xf]
        %v598 = vld [vmem:[%s554 + $0x4] sm:$0x3]
        %v601 = vunpack.c.l.b16 %v595
        %v602 = vunpack.c.l.b16 %v596
        %v603 = vpack.c.b16 %v602, %v601
        %vm604 = vcmask 64512
        %v606 = vsel %vm604, %v594, 0
        %v609 = vsel %vm604, %v603, 0
        %611 = vmatpush.bf16.xpose.msra.mxu0 0
        %612 = vmatpush.bf16.xpose.msra.mxu0 0
        %613 = vmatpush.bf16.xpose.msra.mxu0 0
        %614 = vmatpush.bf16.xpose.msra.mxu0 0
        %615 = vmatpush.bf16.xpose.msra.mxu0 0
        %616 = vmatpush.bf16.xpose.msra.mxu0 0
        %617 = vmatpush.bf16.xpose.msra.mxu0 0
        %618 = vmatpush.bf16.xpose.msra.mxu0 %v609
        %619 = vmatmul.bf16.gmra.mxu0 %v606
        %v620 = vpop.f32.mrf.mxu0
        %v621 = vadd.f32 0.0, %v620
        %v622 = vpop.f32.mrf.mxu0
        %623 = vdwg.mxu0
        %v624 = vmul.f32 %v621, 0.35355338
        %vm625 = vcmask 97280
        %v626 = vsel %vm625, %v624, -inf
        %627 = vmax.xlane.f32.xlu0 %v626
        %v628 = vpop.xlane.xlu0 %627
        %v629 = vsub.f32 %v624, %v628
        %v630 = vmul.f32 %v629, 1.442695
        %v631 = vpow.pop %v630
        %v632 = vsel %vm625, %v631, 0.0
        %633 = vadd.xlane.f32.xlu0 %v632
        %v634 = vpop.xlane.xlu0 %633
        %v635 = vrcp.pop %v634
        %v636 = vmul.f32 %v631, %v635
        %v637 = vpack.c.bf16 %v636, %v636
        %v640 = vunpack.c.l.b16 %v597
        %v641 = vunpack.c.l.b16 %v598
        %v642 = vpack.c.b16 %v641, %v640
        %v644 = vsel %vm625, %v637, 0
        %vm646 = vcmask 1045504
        %v648 = vsel %vm646, %v642, 0
        %650 = vmatpush.bf16.msra.mxu0 0
        %651 = vmatpush.bf16.msra.mxu0 0
        %652 = vmatpush.bf16.msra.mxu0 0
        %653 = vmatpush.bf16.msra.mxu0 0
        %654 = vmatpush.bf16.msra.mxu0 0
        %655 = vmatpush.bf16.msra.mxu0 0
        %656 = vmatpush.bf16.msra.mxu0 0
        %657 = vmatpush.bf16.msra.mxu0 %v648
        %658 = vmatmul.bf16.gmra.mxu0 %v644
        %v659 = vpop.f32.mrf.mxu0
        %v660 = vadd.f32 0.0, %v659
        %v661 = vpop.f32.mrf.mxu0
        %662 = vdwg.mxu0
        %v663 = vpack.c.bf16 %v660, %v660
        %vm664 = vcmask 60416
        %665 = vst.msk [vmem:[#allocation2] sm:$0xf] %vm664, %v663
        %s666 = scalar_lea.vmem %s3, 16
        %v667 = vld [vmem:[%s666] sm:$0xf]
        %v668 = vld [vmem:[%s666 + $0x4] sm:$0xf]
        %v669 = vld [vmem:[%s666 + $0x8] sm:$0xf]
        %v670 = vld [vmem:[%s666 + $0xc] sm:$0xf]
        %s671 = scalar_lea.vmem %s4, 1
        %v672 = vld [vmem:[%s671] sm:$0x1]
        %v674 = vperm.slane %v672, 0
        %v680 = vunpack.c.l.b16 %v667
        %v681 = vunpack.c.l.b16 %v668
        %v682 = vunpack.c.l.b16 %v669
        %v683 = vunpack.c.l.b16 %v670
        %v684 = vpack.c.b16 %v681, %v680
        %v685 = vpack.c.b16 %v683, %v682
        %688 = vmatpush.bf16.msra.mxu0 0
        %689 = vmatpush.bf16.msra.mxu0 0
        %690 = vmatpush.bf16.msra.mxu0 0
        %691 = vmatpush.bf16.msra.mxu0 0
        %692 = vmatpush.bf16.msra.mxu0 0
        %693 = vmatpush.bf16.msra.mxu0 0
        %694 = vmatpush.bf16.msra.mxu0 %v685
        %695 = vmatpush.bf16.msra.mxu0 %v684
        %696 = vmatmul.bf16.gmra.mxu0 %v579
        %v697 = vpop.f32.mrf.mxu0
        %v698 = vadd.f32 %v674, %v697
        %v699 = vpop.f32.mrf.mxu0
        %700 = vdwg.mxu0
        %v701 = vpack.c.bf16 %v698, %v698
        %s702 = scalar_lea.vmem %s549, 8
        %v703 = vld [vmem:[%s702] sm:$0xf]
        %v704 = vld [vmem:[%s702 + $0x4] sm:$0x3]
        %s705 = scalar_lea.vmem %s554, 8
        %v706 = vld [vmem:[%s705] sm:$0xf]
        %v707 = vld [vmem:[%s705 + $0x4] sm:$0x3]
        %v710 = vunpack.c.l.b16 %v703
        %v711 = vunpack.c.l.b16 %v704
        %v712 = vpack.c.b16 %v711, %v710
        %v714 = vsel %vm604, %v701, 0
        %v717 = vsel %vm604, %v712, 0
        %719 = vmatpush.bf16.xpose.msra.mxu0 0
        %720 = vmatpush.bf16.xpose.msra.mxu0 0
        %721 = vmatpush.bf16.xpose.msra.mxu0 0
        %722 = vmatpush.bf16.xpose.msra.mxu0 0
        %723 = vmatpush.bf16.xpose.msra.mxu0 0
        %724 = vmatpush.bf16.xpose.msra.mxu0 0
        %725 = vmatpush.bf16.xpose.msra.mxu0 0
        %726 = vmatpush.bf16.xpose.msra.mxu0 %v717
        %727 = vmatmul.bf16.gmra.mxu0 %v714
        %v728 = vpop.f32.mrf.mxu0
        %v729 = vadd.f32 0.0, %v728
        %v730 = vpop.f32.mrf.mxu0
        %731 = vdwg.mxu0
        %v732 = vmul.f32 %v729, 0.35355338
        %v733 = vsel %vm625, %v732, -inf
        %734 = vmax.xlane.f32.xlu0 %v733
        %v735 = vpop.xlane.xlu0 %734
        %v736 = vsub.f32 %v732, %v735
        %v737 = vmul.f32 %v736, 1.442695
        %v738 = vpow.pop %v737
        %v739 = vsel %vm625, %v738, 0.0
        %740 = vadd.xlane.f32.xlu0 %v739
        %v741 = vpop.xlane.xlu0 %740
        %v742 = vrcp.pop %v741
        %v743 = vmul.f32 %v738, %v742
        %v744 = vpack.c.bf16 %v743, %v743
        %v747 = vunpack.c.l.b16 %v706
        %v748 = vunpack.c.l.b16 %v707
        %v749 = vpack.c.b16 %v748, %v747
        %v751 = vsel %vm625, %v744, 0
        %v754 = vsel %vm646, %v749, 0
        %756 = vmatpush.bf16.msra.mxu0 0
        %757 = vmatpush.bf16.msra.mxu0 0
        %758 = vmatpush.bf16.msra.mxu0 0
        %759 = vmatpush.bf16.msra.mxu0 0
        %760 = vmatpush.bf16.msra.mxu0 0
        %761 = vmatpush.bf16.msra.mxu0 0
        %762 = vmatpush.bf16.msra.mxu0 0
        %763 = vmatpush.bf16.msra.mxu0 %v754
        %764 = vmatmul.bf16.gmra.mxu0 %v751
        %v765 = vpop.f32.mrf.mxu0
        %v766 = vadd.f32 0.0, %v765
        %v767 = vpop.f32.mrf.mxu0
        %768 = vdwg.mxu0
        %v769 = vpack.c.bf16 %v766, %v766
        %771 = vrot.lane.b32.xlu0 %v769, 8
        %v772 = vpop.permute.xlu0 %771
        %vm774 = vcmask 126016
        %775 = vst.msk [vmem:[#allocation2] sm:$0xf] %vm774, %v772
        %s776 = scalar_lea.vmem %s3, 32
        %v777 = vld [vmem:[%s776] sm:$0xf]
        %v778 = vld [vmem:[%s776 + $0x4] sm:$0xf]
        %v779 = vld [vmem:[%s776 + $0x8] sm:$0xf]
        %v780 = vld [vmem:[%s776 + $0xc] sm:$0xf]
        %s781 = scalar_lea.vmem %s4, 2
        %v782 = vld [vmem:[%s781] sm:$0x1]
        %v784 = vperm.slane %v782, 0
        %v790 = vunpack.c.l.b16 %v777
        %v791 = vunpack.c.l.b16 %v778
        %v792 = vunpack.c.l.b16 %v779
        %v793 = vunpack.c.l.b16 %v780
        %v794 = vpack.c.b16 %v791, %v790
        %v795 = vpack.c.b16 %v793, %v792
        %798 = vmatpush.bf16.msra.mxu0 0
        %799 = vmatpush.bf16.msra.mxu0 0
        %800 = vmatpush.bf16.msra.mxu0 0
        %801 = vmatpush.bf16.msra.mxu0 0
        %802 = vmatpush.bf16.msra.mxu0 0
        %803 = vmatpush.bf16.msra.mxu0 0
        %804 = vmatpush.bf16.msra.mxu0 %v795
        %805 = vmatpush.bf16.msra.mxu0 %v794
        %806 = vmatmul.bf16.gmra.mxu0 %v579
        %v807 = vpop.f32.mrf.mxu0
        %v808 = vadd.f32 %v784, %v807
        %v809 = vpop.f32.mrf.mxu0
        %810 = vdwg.mxu0
        %v811 = vpack.c.bf16 %v808, %v808
        %s812 = scalar_lea.vmem %s549, 16
        %v813 = vld [vmem:[%s812] sm:$0xf]
        %v814 = vld [vmem:[%s812 + $0x4] sm:$0x3]
        %s815 = scalar_lea.vmem %s554, 16
        %v816 = vld [vmem:[%s815] sm:$0xf]
        %v817 = vld [vmem:[%s815 + $0x4] sm:$0x3]
        %v820 = vunpack.c.l.b16 %v813
        %v821 = vunpack.c.l.b16 %v814
        %v822 = vpack.c.b16 %v821, %v820
        %v824 = vsel %vm604, %v811, 0
        %v827 = vsel %vm604, %v822, 0
        %829 = vmatpush.bf16.xpose.msra.mxu0 0
        %830 = vmatpush.bf16.xpose.msra.mxu0 0
        %831 = vmatpush.bf16.xpose.msra.mxu0 0
        %832 = vmatpush.bf16.xpose.msra.mxu0 0
        %833 = vmatpush.bf16.xpose.msra.mxu0 0
        %834 = vmatpush.bf16.xpose.msra.mxu0 0
        %835 = vmatpush.bf16.xpose.msra.mxu0 0
        %836 = vmatpush.bf16.xpose.msra.mxu0 %v827
        %837 = vmatmul.bf16.gmra.mxu0 %v824
        %v838 = vpop.f32.mrf.mxu0
        %v839 = vadd.f32 0.0, %v838
        %v840 = vpop.f32.mrf.mxu0
        %841 = vdwg.mxu0
        %v842 = vmul.f32 %v839, 0.35355338
        %v843 = vsel %vm625, %v842, -inf
        %844 = vmax.xlane.f32.xlu0 %v843
        %v845 = vpop.xlane.xlu0 %844
        %v846 = vsub.f32 %v842, %v845
        %v847 = vmul.f32 %v846, 1.442695
        %v848 = vpow.pop %v847
        %v849 = vsel %vm625, %v848, 0.0
        %850 = vadd.xlane.f32.xlu0 %v849
        %v851 = vpop.xlane.xlu0 %850
        %v852 = vrcp.pop %v851
        %v853 = vmul.f32 %v848, %v852
        %v854 = vpack.c.bf16 %v853, %v853
        %v857 = vunpack.c.l.b16 %v816
        %v858 = vunpack.c.l.b16 %v817
        %v859 = vpack.c.b16 %v858, %v857
        %v861 = vsel %vm625, %v854, 0
        %v864 = vsel %vm646, %v859, 0
        %866 = vmatpush.bf16.msra.mxu0 0
        %867 = vmatpush.bf16.msra.mxu0 0
        %868 = vmatpush.bf16.msra.mxu0 0
        %869 = vmatpush.bf16.msra.mxu0 0
        %870 = vmatpush.bf16.msra.mxu0 0
        %871 = vmatpush.bf16.msra.mxu0 0
        %872 = vmatpush.bf16.msra.mxu0 0
        %873 = vmatpush.bf16.msra.mxu0 %v864
        %874 = vmatmul.bf16.gmra.mxu0 %v861
        %v875 = vpop.f32.mrf.mxu0
        %v876 = vadd.f32 0.0, %v875
        %v877 = vpop.f32.mrf.mxu0
        %878 = vdwg.mxu0
        %v879 = vpack.c.bf16 %v876, %v876
        %881 = vrot.lane.b32.xlu0 %v879, 16
        %v882 = vpop.permute.xlu0 %881
        %vm884 = vcmask 191616
        %885 = vst.msk [vmem:[#allocation2] sm:$0xf] %vm884, %v882
        %s886 = scalar_lea.vmem %s3, 48
        %v887 = vld [vmem:[%s886] sm:$0xf]
        %v888 = vld [vmem:[%s886 + $0x4] sm:$0xf]
        %v889 = vld [vmem:[%s886 + $0x8] sm:$0xf]
        %v890 = vld [vmem:[%s886 + $0xc] sm:$0xf]
        %s891 = scalar_lea.vmem %s4, 3
        %v892 = vld [vmem:[%s891] sm:$0x1]
        %v894 = vperm.slane %v892, 0
        %v900 = vunpack.c.l.b16 %v887
        %v901 = vunpack.c.l.b16 %v888
        %v902 = vunpack.c.l.b16 %v889
        %v903 = vunpack.c.l.b16 %v890
        %v904 = vpack.c.b16 %v901, %v900
        %v905 = vpack.c.b16 %v903, %v902
        %908 = vmatpush.bf16.msra.mxu0 0
        %909 = vmatpush.bf16.msra.mxu0 0
        %910 = vmatpush.bf16.msra.mxu0 0
        %911 = vmatpush.bf16.msra.mxu0 0
        %912 = vmatpush.bf16.msra.mxu0 0
        %913 = vmatpush.bf16.msra.mxu0 0
        %914 = vmatpush.bf16.msra.mxu0 %v905
        %915 = vmatpush.bf16.msra.mxu0 %v904
        %916 = vmatmul.bf16.gmra.mxu0 %v579
        %v917 = vpop.f32.mrf.mxu0
        %v918 = vadd.f32 %v894, %v917
        %v919 = vpop.f32.mrf.mxu0
        %920 = vdwg.mxu0
        %v921 = vpack.c.bf16 %v918, %v918
        %s922 = scalar_lea.vmem %s549, 24
        %v923 = vld [vmem:[%s922] sm:$0xf]
        %v924 = vld [vmem:[%s922 + $0x4] sm:$0x3]
        %s925 = scalar_lea.vmem %s554, 24
        %v926 = vld [vmem:[%s925] sm:$0xf]
        %v927 = vld [vmem:[%s925 + $0x4] sm:$0x3]
        %v930 = vunpack.c.l.b16 %v923
        %v931 = vunpack.c.l.b16 %v924
        %v932 = vpack.c.b16 %v931, %v930
        %v934 = vsel %vm604, %v921, 0
        %v937 = vsel %vm604, %v932, 0
        %939 = vmatpush.bf16.xpose.msra.mxu0 0
        %940 = vmatpush.bf16.xpose.msra.mxu0 0
        %941 = vmatpush.bf16.xpose.msra.mxu0 0
        %942 = vmatpush.bf16.xpose.msra.mxu0 0
        %943 = vmatpush.bf16.xpose.msra.mxu0 0
        %944 = vmatpush.bf16.xpose.msra.mxu0 0
        %945 = vmatpush.bf16.xpose.msra.mxu0 0
        %946 = vmatpush.bf16.xpose.msra.mxu0 %v937
        %947 = vmatmul.bf16.gmra.mxu0 %v934
        %v948 = vpop.f32.mrf.mxu0
        %v949 = vadd.f32 0.0, %v948
        %v950 = vpop.f32.mrf.mxu0
        %951 = vdwg.mxu0
        %v952 = vmul.f32 %v949, 0.35355338
        %v953 = vsel %vm625, %v952, -inf
        %954 = vmax.xlane.f32.xlu0 %v953
        %v955 = vpop.xlane.xlu0 %954
        %v956 = vsub.f32 %v952, %v955
        %v957 = vmul.f32 %v956, 1.442695
        %v958 = vpow.pop %v957
        %v959 = vsel %vm625, %v958, 0.0
        %960 = vadd.xlane.f32.xlu0 %v959
        %v961 = vpop.xlane.xlu0 %960
        %v962 = vrcp.pop %v961
        %v963 = vmul.f32 %v958, %v962
        %v964 = vpack.c.bf16 %v963, %v963
        %v967 = vunpack.c.l.b16 %v926
        %v968 = vunpack.c.l.b16 %v927
        %v969 = vpack.c.b16 %v968, %v967
        %v971 = vsel %vm625, %v964, 0
        %v974 = vsel %vm646, %v969, 0
        %976 = vmatpush.bf16.msra.mxu0 0
        %977 = vmatpush.bf16.msra.mxu0 0
        %978 = vmatpush.bf16.msra.mxu0 0
        %979 = vmatpush.bf16.msra.mxu0 0
        %980 = vmatpush.bf16.msra.mxu0 0
        %981 = vmatpush.bf16.msra.mxu0 0
        %982 = vmatpush.bf16.msra.mxu0 0
        %983 = vmatpush.bf16.msra.mxu0 %v974
        %984 = vmatmul.bf16.gmra.mxu0 %v971
        %v985 = vpop.f32.mrf.mxu0
        %v986 = vadd.f32 0.0, %v985
        %v987 = vpop.f32.mrf.mxu0
        %988 = vdwg.mxu0
        %v989 = vpack.c.bf16 %v986, %v986
        %991 = vrot.lane.b32.xlu0 %v989, 24
        %v992 = vpop.permute.xlu0 %991
        %vm994 = vcmask 257216
        %995 = vst.msk [vmem:[#allocation2] sm:$0xf] %vm994, %v992
        %v996 = vld [vmem:[#allocation2] sm:$0xf]
        %v997 = vld [vmem:[%s5] sm:$0xf]
        %v998 = vld [vmem:[%s5 + $0x4] sm:$0xf]
        %v999 = vld [vmem:[%s5 + $0x8] sm:$0xf]
        %v1000 = vld [vmem:[%s5 + $0xc] sm:$0xf]
        %v1001 = vld [vmem:[%s6] sm:$0x1]
        %v1003 = vperm.slane %v1001, 0
        %v1009 = vunpack.c.l.b16 %v997
        %v1010 = vunpack.c.l.b16 %v998
        %v1011 = vunpack.c.l.b16 %v999
        %v1012 = vunpack.c.l.b16 %v1000
        %v1013 = vpack.c.b16 %v1010, %v1009
        %v1014 = vpack.c.b16 %v1012, %v1011
        %v1018 = vsel %vm577, %v996, 0
        %1020 = vmatpush.bf16.msra.mxu0 0
        %1021 = vmatpush.bf16.msra.mxu0 0
        %1022 = vmatpush.bf16.msra.mxu0 0
        %1023 = vmatpush.bf16.msra.mxu0 0
        %1024 = vmatpush.bf16.msra.mxu0 0
        %1025 = vmatpush.bf16.msra.mxu0 0
        %1026 = vmatpush.bf16.msra.mxu0 %v1014
        %1027 = vmatpush.bf16.msra.mxu0 %v1013
        %1028 = vmatmul.bf16.gmra.mxu0 %v1018
        %v1029 = vpop.f32.mrf.mxu0
        %v1030 = vadd.f32 %v1003, %v1029
        %v1031 = vpop.f32.mrf.mxu0
        %1032 = vdwg.mxu0
        %v1033 = vunpack.c.l.bf16 %v556
        %v1034 = vadd.f32 %v1033, %v1030
        %v1035 = vld [vmem:[%s7] sm:$0x1]
        %v1036 = vld [vmem:[%s8] sm:$0x1]
        %v1037 = vsel %vm577, %v1034, 0.0
        %1038 = vadd.xlane.f32.xlu0 %v1037
        %v1039 = vpop.xlane.xlu0 %1038
        %v1040 = vrcp.pop 32.0
        %v1041 = vmul.f32 32.0, %v1040
        %v1042 = vsub.f32 1.0, %v1041
        %v1043 = vmul.f32 %v1040, %v1042
        %v1044 = vadd.f32 %v1040, %v1043
        %vm1045 = vweird.f32 %v1040
        %v1046 = vsel %vm1045, %v1040, %v1044
        %v1047 = vmul.f32 %v1039, %v1046
        %v1048 = vsub.f32 %v1034, %v1047
        %v1049 = vmul.f32 %v1048, %v1048
        %v1050 = vsel %vm577, %v1049, 0.0
        %1051 = vadd.xlane.f32.xlu0 %v1050
        %v1052 = vpop.xlane.xlu0 %1051
        %v1053 = vmul.f32 %v1052, %v1046
        %v1054 = vadd.f32 %v1053, 1e-05
        %v1055 = vrsqrt.pop %v1054
        %v1056 = vmul.f32 %v1055, %v1054
        %v1057 = vmul.f32 %v1056, %v1055
        %v1058 = vmul.f32 0.5, %v1057
        %v1059 = vsub.f32 1.5, %v1058
        %v1060 = vmul.f32 %v1055, %v1059
        %vm1061 = vweird.f32 %v1054
        %vm1062 = vweird.f32 %v1055
        %vm1063 = vmor %vm1061, %vm1062
        %v1064 = vsel %vm1063, %v1055, %v1060
        %v1065 = vmul.f32 %v1048, %v1064
        %v1067 = vperm.slane %v1035, 0
        %v1069 = vmul.f32 %v1065, %v1067
        %v1071 = vperm.slane %v1036, 0
        %v1073 = vadd.f32 %v1069, %v1071
        %v1074 = vpack.c.bf16 %v1073, %v1073
        %v1075 = vld [vmem:[%s9] sm:$0xf]
        %v1076 = vld [vmem:[%s9 + $0x4] sm:$0xf]
        %v1077 = vld [vmem:[%s9 + $0x8] sm:$0xf]
        %v1078 = vld [vmem:[%s9 + $0xc] sm:$0xf]
        %v1079 = vld [vmem:[%s10] sm:$0x1]
        %v1081 = vperm.slane %v1079, 0
        %v1087 = vunpack.c.l.b16 %v1075
        %v1088 = vunpack.c.l.b16 %v1076
        %v1089 = vunpack.c.l.b16 %v1077
        %v1090 = vunpack.c.l.b16 %v1078
        %v1091 = vpack.c.b16 %v1088, %v1087
        %v1092 = vpack.c.b16 %v1090, %v1089
        %v1096 = vsel %vm577, %v1074, 0
        %1098 = vmatpush.bf16.msra.mxu0 0
        %1099 = vmatpush.bf16.msra.mxu0 0
        %1100 = vmatpush.bf16.msra.mxu0 0
        %1101 = vmatpush.bf16.msra.mxu0 0
        %1102 = vmatpush.bf16.msra.mxu0 0
        %1103 = vmatpush.bf16.msra.mxu0 0
        %1104 = vmatpush.bf16.msra.mxu0 %v1092
        %1105 = vmatpush.bf16.msra.mxu0 %v1091
        %1106 = vmatmul.bf16.gmra.mxu0 %v1096
        %v1107 = vpop.f32.mrf.mxu0
        %v1108 = vadd.f32 %v1081, %v1107
        %v1109 = vpop.f32.mrf.mxu0
        %1110 = vdwg.mxu0
        %v1111 = vmax.f32 %v1108, 0.0
        %v1112 = vpack.c.bf16 %v1111, %v1111
        %v1113 = vld [vmem:[%s11] sm:$0xf]
        %v1114 = vld [vmem:[%s11 + $0x4] sm:$0xf]
        %v1115 = vld [vmem:[%s11 + $0x8] sm:$0xf]
        %v1116 = vld [vmem:[%s11 + $0xc] sm:$0xf]
        %v1117 = vld [vmem:[%s11 + $0x10] sm:$0xf]
        %v1118 = vld [vmem:[%s11 + $0x14] sm:$0xf]
        %v1119 = vld [vmem:[%s11 + $0x18] sm:$0xf]
        %v1120 = vld [vmem:[%s11 + $0x1c] sm:$0xf]
        %v1121 = vld [vmem:[%s11 + $0x20] sm:$0xf]
        %v1122 = vld [vmem:[%s11 + $0x24] sm:$0xf]
        %v1123 = vld [vmem:[%s11 + $0x28] sm:$0xf]
        %v1124 = vld [vmem:[%s11 + $0x2c] sm:$0xf]
        %v1125 = vld [vmem:[%s11 + $0x30] sm:$0xf]
        %v1126 = vld [vmem:[%s11 + $0x34] sm:$0xf]
        %v1127 = vld [vmem:[%s11 + $0x38] sm:$0xf]
        %v1128 = vld [vmem:[%s11 + $0x3c] sm:$0xf]
        %v1129 = vld [vmem:[%s12] sm:$0x1]
        %v1131 = vperm.slane %v1129, 0
        %v1149 = vunpack.c.l.b16 %v1113
        %v1150 = vunpack.c.l.b16 %v1114
        %v1151 = vunpack.c.l.b16 %v1115
        %v1152 = vunpack.c.l.b16 %v1116
        %v1153 = vunpack.c.l.b16 %v1117
        %v1154 = vunpack.c.l.b16 %v1118
        %v1155 = vunpack.c.l.b16 %v1119
        %v1156 = vunpack.c.l.b16 %v1120
        %v1157 = vunpack.c.l.b16 %v1121
        %v1158 = vunpack.c.l.b16 %v1122
        %v1159 = vunpack.c.l.b16 %v1123
        %v1160 = vunpack.c.l.b16 %v1124
        %v1161 = vunpack.c.l.b16 %v1125
        %v1162 = vunpack.c.l.b16 %v1126
        %v1163 = vunpack.c.l.b16 %v1127
        %v1164 = vunpack.c.l.b16 %v1128
        %v1165 = vpack.c.b16 %v1150, %v1149
        %v1166 = vpack.c.b16 %v1152, %v1151
        %v1167 = vpack.c.b16 %v1154, %v1153
        %v1168 = vpack.c.b16 %v1156, %v1155
        %v1169 = vpack.c.b16 %v1158, %v1157
        %v1170 = vpack.c.b16 %v1160, %v1159
        %v1171 = vpack.c.b16 %v1162, %v1161
        %v1172 = vpack.c.b16 %v1164, %v1163
        %1181 = vmatpush.bf16.msra.mxu0 %v1172
        %1182 = vmatpush.bf16.msra.mxu0 %v1171
        %1183 = vmatpush.bf16.msra.mxu0 %v1170
        %1184 = vmatpush.bf16.msra.mxu0 %v1169
        %1185 = vmatpush.bf16.msra.mxu0 %v1168
        %1186 = vmatpush.bf16.msra.mxu0 %v1167
        %1187 = vmatpush.bf16.msra.mxu0 %v1166
        %1188 = vmatpush.bf16.msra.mxu0 %v1165
        %1189 = vmatmul.bf16.gmra.mxu0 %v1112
        %v1190 = vpop.f32.mrf.mxu0
        %v1191 = vadd.f32 %v1131, %v1190
        %v1192 = vpop.f32.mrf.mxu0
        %1193 = vdwg.mxu0
        %v1194 = vadd.f32 %v1073, %v1191
        %v1195 = vld [vmem:[%s13] sm:$0x1]
        %v1196 = vld [vmem:[%s14] sm:$0x1]
        %v1197 = vsel %vm577, %v1194, 0.0
        %1198 = vadd.xlane.f32.xlu0 %v1197
        %v1199 = vpop.xlane.xlu0 %1198
        %v1200 = vmul.f32 %v1199, %v1046
        %v1201 = vsub.f32 %v1194, %v1200
        %v1202 = vmul.f32 %v1201, %v1201
        %v1203 = vsel %vm577, %v1202, 0.0
        %1204 = vadd.xlane.f32.xlu0 %v1203
        %v1205 = vpop.xlane.xlu0 %1204
        %v1206 = vmul.f32 %v1205, %v1046
        %v1207 = vadd.f32 %v1206, 1e-05
        %v1208 = vrsqrt.pop %v1207
        %v1209 = vmul.f32 %v1208, %v1207
        %v1210 = vmul.f32 %v1209, %v1208
        %v1211 = vmul.f32 0.5, %v1210
        %v1212 = vsub.f32 1.5, %v1211
        %v1213 = vmul.f32 %v1208, %v1212
        %vm1214 = vweird.f32 %v1207
        %vm1215 = vweird.f32 %v1208
        %vm1216 = vmor %vm1214, %vm1215
        %v1217 = vsel %vm1216, %v1208, %v1213
        %v1218 = vmul.f32 %v1201, %v1217
        %v1220 = vperm.slane %v1195, 0
        %v1222 = vmul.f32 %v1218, %v1220
        %v1224 = vperm.slane %v1196, 0
        %v1226 = vadd.f32 %v1222, %v1224
        %1227 = vst.msk [vmem:[%s537] sm:$0xff] %vm577, %v1226
        %s1228 = sand.u32 %s383, 1
        %s1229 = scalar_lea.sflag [#allocation4], %s1228
        %s1230 = sand.u32 %s383, 1
        %s1231 = smul.addr %s1230, 8
        %s1232 = scalar_lea.vmem [#allocation3], %s1231
        // Predicated region
        $region81: #{tpu_custom_call.1} parent=79 // pred_check
          %p1233 = pneg %p393
        $region82: #{tpu_custom_call.1} parent=79 // pred_check_branch
          %1235 = sbr.rel (%p1233) target = $region84
        $region83: #{tpu_custom_call.1} parent=79 // pred_region
          %1237 = vsyncadd %s1229, 0
          %s1238 = sadd.s32 %s34, %s33
          %s1239 = smul.addr %s1238, 8
          %s1240 = scalar_lea.hbm %s15, %s1239
          %s1242 = sshll.u32 %s1232, 4
          %s1243 = int_to_ptr.vmem [resolvable:$true] %s1242
          %s1244 = sshll.u32 %s1240, 4
          %s1245 = int_to_ptr.hbm [resolvable:$true] %s1244
          %1247 = dma.vmem_to_hbm [thread:$0]  %s1243, 128, %s1245, %s1229
        $region84: #{tpu_custom_call.1} parent=79 // pred_fallthru
          _
      $region80: #{tpu_custom_call.1} parent=5 // pred_fallthru
        _
      %p1248 = scmp.le.s32.totalorder 2, %s24
      // Predicated region
      $region85: #{tpu_custom_call.1} parent=5 // pred_check
        %p1249 = pneg %p1248
      $region86: #{tpu_custom_call.1} parent=5 // pred_check_branch
        %1251 = sbr.rel (%p1249) target = $region88
      $region87: #{tpu_custom_call.1} parent=5 // pred_region
        %s1252 = ssub.s32 %s24, 2
        // Predicated region
        $region89: #{tpu_custom_call.1} parent=87 // pred_check
          %p1253 = pneg %p399
        $region90: #{tpu_custom_call.1} parent=87 // pred_check_branch
          %1255 = sbr.rel (%p1253) target = $region92
        $region91: #{tpu_custom_call.1} parent=87 // pred_region
          %s1256 = sand.u32 %s384, 1
          %s1257 = scalar_lea.sflag [#allocation4], %s1256
          %s1258 = sand.u32 %s384, 1
          %s1259 = smul.addr %s1258, 8
          %s1260 = scalar_lea.vmem [#allocation3], %s1259
          %1262 = dma.done %s1257, 128
        $region92: #{tpu_custom_call.1} parent=87 // pred_fallthru
          _
      $region88: #{tpu_custom_call.1} parent=5 // pred_fallthru
        _
    $region6: #{tpu_custom_call.1} parent=1 // loop_footer
      %s28 = sadd.s32 1, %s24
    $region7: #{tpu_custom_call.1} parent=1 // loop_footer_branch
      %23 = sbr.rel target = $region3
    $region8: #{tpu_custom_call.1} parent=1 // loop_exit
      _
    %1263 = vsyncpa [#allocation4], 1
    %s1264 = scalar_lea.sflag [#allocation4], 1
    %1265 = vsyncpa %s1264, 1

</llo_original>
